<compile_context>
chip_gen: v7x
topology: tpu7x:2x2x1
jax: 0.10.0
libtpu: 0.0.40
codegen_flags: <defaults>
</compile_context>

<pallas_src>
import functools
import math

import jax
import jax.numpy as jnp
from jax.experimental import pallas as pl
from jax.experimental.pallas import tpu as pltpu


def _round_up(x, m):
    return ((x + m - 1) // m) * m


# --------------------------------------------------------------------------
# Kernels.  Grid = (i over TM row tiles, j over TN column tiles, k over
# feature chunks).  Inputs: x (N, D) row-major, yt = y.T (D, M).  The output
# tile (TM, TN) and its f32 accumulator stay resident across the k axis.
# --------------------------------------------------------------------------


def _cdist_vpu_kernel(x_ref, yt_ref, o_ref, acc_ref, *, p):
    """Direct-subtraction ('donot_use_mm') tile for an arbitrary p-norm.

    x_ref  : (TM, DC) tracklet feature chunk (features on lanes)
    yt_ref : (DC, TN) detection feature chunk, transposed (detections on lanes)
    o_ref  : (TM, TN) output tile
    acc_ref: (TM, TN) f32 accumulator, resident across the feature grid axis
    """
    k = pl.program_id(2)
    nk = pl.num_programs(2)
    is_inf = math.isinf(p)

    @pl.when(k == 0)
    def _():
        acc_ref[...] = jnp.zeros_like(acc_ref)  # |diff| >= 0, so 0 works for p=inf too

    x = x_ref[...].astype(jnp.float32)    # (TM, DC)
    yt = yt_ref[...].astype(jnp.float32)  # (DC, TN)
    dc = x.shape[1]

    acc = acc_ref[...]
    # Per-feature broadcast (TM,1) - (1,TN): TN stays on lanes, the feature
    # reduction is plain vreg adds/maxes (no XLU cross-lane reduce), and acc
    # is already in the output layout.  Working set is a handful of vregs.
    for c in range(dc):                                   # static unroll, DC <= 128
        d = x[:, c:c + 1] - yt[c:c + 1, :]                # (TM, TN)
        if is_inf:
            acc = jnp.maximum(acc, jnp.abs(d))
        elif p == 2.0:
            acc = acc + d * d
        elif p == 1.0:
            acc = acc + jnp.abs(d)
        elif float(p).is_integer() and 2.0 < p <= 4.0:
            a = jnp.abs(d)
            pw = a
            for _ in range(int(p) - 1):                   # repeated VPU multiplies
                pw = pw * a
            acc = acc + pw
        else:
            acc = acc + jnp.abs(d) ** p                   # EUP pow fallback
    acc_ref[...] = acc

    @pl.when(k == nk - 1)
    def _():
        a = acc_ref[...]
        if is_inf or p == 1.0:
            out = a
        elif p == 2.0:
            out = jnp.sqrt(a)
        else:
            out = a ** (1.0 / p)
        o_ref[...] = out.astype(o_ref.dtype)


def _cdist_mxu_kernel(x_ref, yt_ref, o_ref, acc_ref):
    """p == 2 MXU Gram-matrix path: ||x||^2 + ||y||^2 - 2 x.y (clamped at 0).

    Not bit-equivalent to 'donot_use_mm_for_euclid_dist': catastrophic
    cancellation can return 0 for nearly-identical rows.  Opt out with
    use_mm_for_euclid=False.
    """
    k = pl.program_id(2)
    nk = pl.num_programs(2)

    @pl.when(k == 0)
    def _():
        acc_ref[...] = jnp.zeros_like(acc_ref)

    x = x_ref[...]        # keep native dtype (bf16 feeds the MXU directly)
    yt = yt_ref[...]
    xf = x.astype(jnp.float32)
    ytf = yt.astype(jnp.float32)
    xx = jnp.sum(xf * xf, axis=1, keepdims=True)          # (TM, 1)
    yy = jnp.sum(ytf * ytf, axis=0, keepdims=True)        # (1, TN)
    xy = jax.lax.dot_general(x, yt, (((1,), (0,)), ((), ())),
                             preferred_element_type=jnp.float32)
    acc_ref[...] += xx + yy - 2.0 * xy

    @pl.when(k == nk - 1)
    def _():
        o_ref[...] = jnp.sqrt(jnp.maximum(acc_ref[...], 0.0)).astype(o_ref.dtype)


# --------------------------------------------------------------------------
# Wrapper.
# --------------------------------------------------------------------------


def _jnp_cdist(xs, ys, p):
    diff = xs[:, None, :].astype(jnp.float32) - ys[None, :, :].astype(jnp.float32)
    if math.isinf(p):
        return jnp.max(jnp.abs(diff), axis=-1)
    if p == 2.0:
        return jnp.sqrt(jnp.sum(diff * diff, axis=-1))
    if p == 1.0:
        return jnp.sum(jnp.abs(diff), axis=-1)
    return jnp.sum(jnp.abs(diff) ** p, axis=-1) ** (1.0 / p)


def pallas_cdist(xs, ys, p=2.0, *, use_mm_for_euclid=True,
                 min_pallas_elems=1 << 16):
    """Pairwise p-norm distance matrix between xs (N, D) and ys (M, D)."""
    xs = jnp.asarray(xs)
    ys = jnp.asarray(ys)
    assert xs.ndim == 2 and ys.ndim == 2
    n, d = xs.shape
    m, d2 = ys.shape
    assert d == d2, "feature dims must match"
    p = float(p)
    # TODO(synk): torch.cdist p == 0 (hamming count) and negative p are not supported.
    assert p > 0.0, "only p > 0 (including +inf) is supported"

    out_dtype = jnp.result_type(xs.dtype, ys.dtype)
    if xs.dtype != out_dtype:
        xs = xs.astype(out_dtype)
    if ys.dtype != out_dtype:
        ys = ys.astype(out_dtype)

    # Degenerate tracking cases: no tracklets / detections / features.
    if n == 0 or m == 0 or d == 0:
        return jnp.zeros((n, m), out_dtype)

    # Tiny problems: pallas_call fixed overhead + padding M up to 128 lanes
    # dominates; let XLA fuse the broadcast instead.
    if n * m * d < min_pallas_elems:
        return _jnp_cdist(xs, ys, p).astype(out_dtype)

    use_mxu = use_mm_for_euclid and p == 2.0
    if use_mxu:
        tm0, tn0, dk_max = 256, 256, 256     # 256-wide tiles fill v6e/v7x MXUs
    else:
        tm0, tn0, dk_max = 64, 128, 128      # vreg-resident working set on the VPU

    # Feature axis: pad to a multiple of 8; chunk onto a 3rd grid axis when
    # large (chunk must then be a multiple of 128 to stay a valid lane block).
    d_pad = _round_up(d, 8)
    if d_pad <= dk_max:
        dk = d_pad
    else:
        dk = dk_max
        d_pad = _round_up(d, dk)
    grid_k = d_pad // dk

    # Row / column tiles.  Output's last dim (TN) is a multiple of 128 so
    # stores are lane-dense and unmasked.
    tm = min(tm0, _round_up(n, 8))
    tn = min(tn0, _round_up(m, 128))
    n_pad = _round_up(n, tm)
    m_pad = _round_up(m, tn)

    # Guarantee >= 2 parallel grid steps (keeps both v7x TensorCores busy;
    # costs one extra ~0.35us step on single-TC v5e/v6e).
    if n_pad // tm == 1 and m_pad // tn == 1:
        if tn > 128:
            tn = _round_up((tn + 1) // 2, 128)
            m_pad = _round_up(m, tn)
        elif tm > 8:
            tm = _round_up((tm + 1) // 2, 8)
            n_pad = _round_up(n, tm)

    # Pad (zeros are neutral for every supported p) and pre-transpose the
    # detections so TN is the lane axis inside the kernel.
    if n_pad != n or d_pad != d:
        xs = jnp.pad(xs, ((0, n_pad - n), (0, d_pad - d)))
    ys_t = ys.T                                           # (D, M)
    if m_pad != m or d_pad != d:
        ys_t = jnp.pad(ys_t, ((0, d_pad - d), (0, m_pad - m)))

    if use_mxu:
        kernel = _cdist_mxu_kernel
    else:
        kernel = functools.partial(_cdist_vpu_kernel, p=p)

    grid = (n_pad // tm, m_pad // tn, grid_k)

    # Double-buffered blocks + accumulator, with headroom; cap well below the
    # 64 MiB per-TC VMEM on v7x.
    est = 4 * (2 * tm * dk + 2 * dk * tn + 2 * tm * tn + tm * tn)
    vmem_limit = int(min(max(2 * est, 16 << 20), 32 << 20))

    out = pl.pallas_call(
        kernel,
        out_shape=jax.ShapeDtypeStruct((n_pad, m_pad), out_dtype),
        grid_spec=pltpu.PrefetchScalarGridSpec(
            num_scalar_prefetch=0,
            grid=grid,
            in_specs=[
                pl.BlockSpec((tm, dk), lambda i, j, k: (i, k)),   # tracklets
                pl.BlockSpec((dk, tn), lambda i, j, k: (k, j)),   # detections^T
            ],
            out_specs=pl.BlockSpec((tm, tn), lambda i, j, k: (i, j)),
            scratch_shapes=[pltpu.VMEM((tm, tn), jnp.float32)],
        ),
        compiler_params=pltpu.CompilerParams(
            dimension_semantics=("parallel", "parallel", "arbitrary"),
            vmem_limit_bytes=vmem_limit,
        ),
    )(xs, ys_t)
    return out[:n, :m]


class Distance:
    """JAX/Pallas port of unitrack.costs.Distance (forward pass only)."""

    def __init__(self, field, select=None, p_norm=2.0, use_mm_for_euclid=True):
        self.required_fields = [field]
        self.field = field
        self.select = list(select) if select is not None else []
        self.p = float(p_norm)
        # Default: MXU Gram-matrix fast path for p == 2.  Set False for
        # bit-faithful 'donot_use_mm_for_euclid_dist' numerics.
        self.use_mm_for_euclid = bool(use_mm_for_euclid)

    def get_field(self, cs, ds):
        ts_field = cs[self.field]
        ds_field = ds[self.field]
        if len(self.select) > 0:
            assert ts_field.shape[1] > max(self.select)
            assert ds_field.shape[1] > max(self.select)
            sel = jnp.asarray(self.select, dtype=jnp.int32)
            ts_field = ts_field[:, sel]
            ds_field = ds_field[:, sel]
        return ts_field, ds_field

    def __call__(self, cs, ds):
        ts_field, ds_field = self.get_field(cs, ds)
        return pallas_cdist(
            ts_field, ds_field, p=self.p,
            use_mm_for_euclid=self.use_mm_for_euclid)


if __name__ == "__main__":
    key = jax.random.PRNGKey(0)
    k1, k2, k3, k4 = jax.random.split(key, 4)

    # --- tiny tracking-sized case (wrapper uses the fused-jnp fast path) ---
    N, M, D = 8, 16, 32
    cs = {"feat": jax.random.normal(k1, (N, D), dtype=jnp.float32)}
    ds = {"feat": jax.random.normal(k2, (M, D), dtype=jnp.float32)}
    diff = cs["feat"][:, None, :] - ds["feat"][None, :, :]
    ref2 = jnp.sqrt(jnp.sum(diff * diff, axis=-1))
    cost = jax.block_until_ready(Distance("feat", p_norm=2.0)(cs, ds))
    assert cost.shape == (N, M)
    assert jnp.allclose(cost, ref2, atol=1e-4, rtol=1e-4)

    sel = [0, 3, 7, 11]
    cost_sel = jax.block_until_ready(
        Distance("feat", select=sel, p_norm=2.0)(cs, ds))
    dsel = cs["feat"][:, sel][:, None, :] - ds["feat"][:, sel][None, :, :]
    ref_sel = jnp.sqrt(jnp.sum(dsel * dsel, axis=-1))
    assert jnp.allclose(cost_sel, ref_sel, atol=1e-4, rtol=1e-4)

    # --- larger case: exercises the Pallas kernels (MXU + VPU paths),
    #     non-multiple-of-tile shapes and the chunked feature grid axis ---
    N2, M2, D2 = 192, 200, 150
    xs = jax.random.normal(k3, (N2, D2), dtype=jnp.float32)
    ys = jax.random.normal(k4, (M2, D2), dtype=jnp.float32)
    dd = xs[:, None, :] - ys[None, :, :]

    # p = 2, default MXU Gram-matrix path.
    ref_l2 = jnp.sqrt(jnp.sum(dd * dd, axis=-1))
    out_l2 = jax.block_until_ready(pallas_cdist(xs, ys, p=2.0))
    assert out_l2.shape == (N2, M2)
    assert jnp.allclose(out_l2, ref_l2, atol=5e-2, rtol=1e-2)

    # p = 2, bit-faithful direct-subtraction ('donot_use_mm') path.
    out_l2d = jax.block_until_ready(
        pallas_cdist(xs, ys, p=2.0, use_mm_for_euclid=False))
    assert jnp.allclose(out_l2d, ref_l2, atol=1e-3, rtol=1e-4)

    # p = 1 (abs/add), p = inf (max), p = 3 (integer power) on the VPU path.
    ref_l1 = jnp.sum(jnp.abs(dd), axis=-1)
    out_l1 = jax.block_until_ready(pallas_cdist(xs, ys, p=1.0))
    assert jnp.allclose(out_l1, ref_l1, atol=1e-3, rtol=1e-4)

    ref_linf = jnp.max(jnp.abs(dd), axis=-1)
    out_linf = jax.block_until_ready(pallas_cdist(xs, ys, p=float("inf")))
    assert jnp.allclose(out_linf, ref_linf, atol=1e-5, rtol=1e-5)

    ref_l3 = jnp.sum(jnp.abs(dd) ** 3, axis=-1) ** (1.0 / 3.0)
    out_l3 = jax.block_until_ready(pallas_cdist(xs, ys, p=3.0))
    assert jnp.allclose(out_l3, ref_l3, atol=5e-3, rtol=5e-3)

    print("KERNEL_OK")
</pallas_src>

<mosaic_0001>
module attributes {stable_mosaic.version = 11 : i64} {
  func.func @_cdist_mxu_kernel(%arg0: i32, %arg1: i32, %arg2: i32, %arg3: memref<192x152xf32, #tpu.memory_space<vmem>>, %arg4: memref<152x128xf32, #tpu.memory_space<vmem>>, %arg5: memref<192x128xf32, #tpu.memory_space<vmem>>, %arg6: memref<192x128xf32, #tpu.memory_space<vmem>>) attributes {dimension_semantics = [#tpu.dimension_semantics<parallel>, #tpu.dimension_semantics<parallel>, #tpu.dimension_semantics<arbitrary>], iteration_bounds = array<i64: 1, 2, 1>, scalar_prefetch = 0 : i64, scratch_operands = 1 : i64, tpu.core_type = #tpu.core_type<tc>, window_params = [{transform_indices = @transform_0, window_bounds = array<i64: 192, 152>}, {transform_indices = @transform_1, window_bounds = array<i64: 152, 128>}, {transform_indices = @transform_2, window_bounds = array<i64: 192, 128>}]} {
    %c0_i32 = arith.constant 0 : i32
    %0 = arith.cmpi eq, %arg2, %c0_i32 : i32
    %1 = arith.extui %0 : i1 to i32
    %c0_i32_0 = arith.constant 0 : i32
    %2 = arith.cmpi ne, %1, %c0_i32_0 : i32
    scf.if %2 {
      %cst_13 = arith.constant 0.000000e+00 : f32
      %24 = vector.broadcast %cst_13 : f32 to vector<192x128xf32>
      %c0_14 = arith.constant 0 : index
      %c0_15 = arith.constant 0 : index
      %25 = vector.load %arg6[%c0_14, %c0_15] : memref<192x128xf32, #tpu.memory_space<vmem>>, vector<192x128xf32>
      tpu.vector_store %arg6[%c0_14, %c0_15], %24 {strides = array<i32>} : memref<192x128xf32, #tpu.memory_space<vmem>>, vector<192x128xf32>,
    } else {
    }
    %c0 = arith.constant 0 : index
    %c0_1 = arith.constant 0 : index
    %3 = vector.load %arg3[%c0, %c0_1] : memref<192x152xf32, #tpu.memory_space<vmem>>, vector<192x152xf32>
    %c0_2 = arith.constant 0 : index
    %c0_3 = arith.constant 0 : index
    %4 = vector.load %arg4[%c0_2, %c0_3] : memref<152x128xf32, #tpu.memory_space<vmem>>, vector<152x128xf32>
    %5 = arith.mulf %3, %3 : vector<192x152xf32>
    %cst = arith.constant dense<0.000000e+00> : vector<192xf32>
    %6 = vector.multi_reduction <add>, %5, %cst [1] : vector<192x152xf32> to vector<192xf32>
    %7 = vector.shape_cast %6 : vector<192xf32> to vector<192x1xf32>
    %8 = arith.mulf %4, %4 : vector<152x128xf32>
    %cst_4 = arith.constant dense<0.000000e+00> : vector<128xf32>
    %9 = vector.multi_reduction <add>, %8, %cst_4 [0] : vector<152x128xf32> to vector<128xf32>
    %10 = vector.shape_cast %9 : vector<128xf32> to vector<1x128xf32>
    %cst_5 = arith.constant dense<0.000000e+00> : vector<192x128xf32>
    %11 = tpu.matmul %3, %4, %cst_5 {dimension_numbers = #tpu.dot_dimension_numbers<[1], [0], [0], [1], [0, 0, 1, 1], [], []>} : vector<192x152xf32>, vector<152x128xf32>, vector<192x128xf32> -> vector<192x128xf32>
    %c0_6 = arith.constant 0 : index
    %c0_7 = arith.constant 0 : index
    %12 = vector.load %arg6[%c0_6, %c0_7] : memref<192x128xf32, #tpu.memory_space<vmem>>, vector<192x128xf32>
    %13 = vector.broadcast %7 : vector<192x1xf32> to vector<192x128xf32>
    %14 = vector.broadcast %10 : vector<1x128xf32> to vector<192x128xf32>
    %15 = arith.addf %13, %14 : vector<192x128xf32>
    %cst_8 = arith.constant 2.000000e+00 : f32
    %16 = vector.broadcast %cst_8 : f32 to vector<192x128xf32>
    %17 = arith.mulf %16, %11 : vector<192x128xf32>
    %18 = arith.subf %15, %17 : vector<192x128xf32>
    %19 = arith.addf %12, %18 : vector<192x128xf32>
    %c0_9 = arith.constant 0 : index
    %c0_10 = arith.constant 0 : index
    %20 = vector.load %arg6[%c0_9, %c0_10] : memref<192x128xf32, #tpu.memory_space<vmem>>, vector<192x128xf32>
    tpu.vector_store %arg6[%c0_9, %c0_10], %19 {strides = array<i32>} : memref<192x128xf32, #tpu.memory_space<vmem>>, vector<192x128xf32>,
    %c0_i32_11 = arith.constant 0 : i32
    %21 = arith.cmpi eq, %arg2, %c0_i32_11 : i32
    %22 = arith.extui %21 : i1 to i32
    %c0_i32_12 = arith.constant 0 : i32
    %23 = arith.cmpi ne, %22, %c0_i32_12 : i32
    scf.if %23 {
      %c0_13 = arith.constant 0 : index
      %c0_14 = arith.constant 0 : index
      %24 = vector.load %arg6[%c0_13, %c0_14] : memref<192x128xf32, #tpu.memory_space<vmem>>, vector<192x128xf32>
      %cst_15 = arith.constant 0.000000e+00 : f32
      %25 = vector.broadcast %cst_15 : f32 to vector<192x128xf32>
      %26 = arith.maximumf %24, %25 : vector<192x128xf32>
      %27 = math.sqrt %26 : vector<192x128xf32>
      %c0_16 = arith.constant 0 : index
      %c0_17 = arith.constant 0 : index
      %28 = vector.load %arg5[%c0_16, %c0_17] : memref<192x128xf32, #tpu.memory_space<vmem>>, vector<192x128xf32>
      tpu.vector_store %arg5[%c0_16, %c0_17], %27 {strides = array<i32>} : memref<192x128xf32, #tpu.memory_space<vmem>>, vector<192x128xf32>,
    } else {
    }
    return
  }
  func.func @transform_0(%arg0: i32, %arg1: i32, %arg2: i32) -> (i32, i32) {
    %c0_i32 = arith.constant 0 : i32
    return %arg0, %arg2 : i32, i32
  }
  func.func @transform_1(%arg0: i32, %arg1: i32, %arg2: i32) -> (i32, i32) {
    %c0_i32 = arith.constant 0 : i32
    return %arg2, %arg1 : i32, i32
  }
  func.func @transform_2(%arg0: i32, %arg1: i32, %arg2: i32) -> (i32, i32) {
    %c0_i32 = arith.constant 0 : i32
    return %arg0, %arg1 : i32, i32
  }
}

</mosaic_0001>

<llo_original>
// kernel: tpu_custom_call.1
$region0: #{tpu_custom_call.1}
  #allocation0 [shape = 'u32[]', space=smem, size = 0x4, offset = 0x4, fixed_abs, tag = 'smem constant byte address 0x4 - core index']
  #allocation1 [shape = 'u32[144,128]{1,0:T(1,128)}', space=vmem, size = 0x12000, scoped, tag = 'internal scratch']
  #allocation2 [shape = 'f32[192,128]{1,0:T(8,128)}', space=vmem, size = 0x18000, scoped, tag = 'scratch operand']
  %s0 = inlined_call_operand.vmem [shape: f32[192,152], index: 0, kind: input, shape index: {}]
  %s1 = inlined_call_operand.vmem [shape: f32[152,256], index: 1, kind: input, shape index: {}]
  %s2 = inlined_call_operand.hbm [shape: f32[192,256], index: 2, kind: output, shape index: {}]
  %s3 = sld [smem:[#allocation0]]
  $region87: #{tpu_custom_call.1} parent=0
    _
  %s5 = ssub.s32 1, %s3
  %s6 = scalar_select 0, %s5, %s3
  $region1: #{tpu_custom_call.1} parent=0
    #allocation3 [shape = 'u8[155648]{0}', space=vmem, size = 0x26000, scoped, tag = 'input window, operand 1']
    #allocation4 [shape = 'u8[196608]{0}', space=vmem, size = 0x30000, scoped, tag = 'output window, operand 0']
    #allocation5 [shape = 's32[2]{0}', space=sflag, size = 0x8, scoped, tag = 'scoped memory for tpu_custom_call.1']
    %7 = vsyncpa [#allocation5], 0
    %s8 = scalar_lea.sflag [#allocation5], 1
    %9 = vsyncpa %s8, 0
    loop: start=0, step=1, limit=4
    $region2: #{tpu_custom_call.1} parent=1 // loop_pre_header
      _
    $region3: #{tpu_custom_call.1} parent=1 // loop_header
      %s11 = sphi 0, %s15
      %p12 = scmp.ge.s32.totalorder %s11, 4
      %s18 = sphi 0, %s37
      %s19 = sphi 0, %s33
      %s20 = sphi 0, %s29
      %s21 = sphi 0, %s18
      %s22 = sphi 0, %s19
      %s23 = sphi 0, %s20
      %s24 = sphi 0, %s21
      %s25 = sphi 0, %s22
      %s26 = sphi 0, %s23
      %s42 = sphi 0, %s44
      %s45 = sphi 0, %s42
      %s46 = sphi 0, %s45
      %s62 = sphi 0, %s46
      %s70 = sphi 0, %s72
      %s73 = sphi 0, %s70
      %s74 = sphi 0, %s73
      %s90 = sphi 0, %s74
      %s98 = sphi 0, %s100
      %s101 = sphi 0, %s98
      %s102 = sphi 0, %s101
      %s118 = sphi 0, %s102
    $region4: #{tpu_custom_call.1} parent=1 // loop_header_branch
      %14 = sbr.rel (%p12) target = $region8
    $region5: #{tpu_custom_call.1} parent=1 // loop_body
      %s16 = ssub.s32 %s11, 1
      %s17 = ssub.s32 %s11, 2
      %s27 = sadd.s32 1, %s20
      %p28 = scmp.ge.s32.totalorder %s27, 1
      %s29 = scalar_select %p28, 0, %s27
      %s30 = sadd.s32 1, %s19
      %s31 = scalar_select %p28, %s30, %s19
      %p32 = scmp.ge.s32.totalorder %s31, 2
      %s33 = scalar_select %p32, 0, %s31
      %s34 = sadd.s32 1, %s18
      %s35 = scalar_select %p32, %s34, %s18
      %p36 = scmp.ge.s32.totalorder %s35, 1
      %s37 = scalar_select %p36, 0, %s35
      %s38 = ssub.s32 %s18, %s37
      %s39 = ssub.s32 %s20, %s29
      %s40 = sor.u32 %s38, %s39
      %p41 = scmp.eq.s32.totalorder %s40, 0
      %s43 = sadd.s32 %s42, 1
      %s44 = scalar_select %p41, %s42, %s43
      %p47 = pneg %p41
      %p48 = scmp.eq.s32.totalorder %s11, 1
      %p49 = por %p47, %p48
      %p50 = scmp.ne.s32.totalorder %s42, %s45
      %p51 = scmp.eq.s32.totalorder %s11, 0
      %p52 = por %p50, %p51
      %p53 = scmp.ne.s32.totalorder %s42, %s45
      %p54 = scmp.eq.s32.totalorder %s16, 1
      %p55 = por %p53, %p54
      %p56 = scmp.ne.s32.totalorder %s45, %s46
      %p57 = scmp.eq.s32.totalorder %s16, 0
      %p58 = por %p56, %p57
      %p59 = scmp.ne.s32.totalorder %s45, %s46
      %p60 = scmp.eq.s32.totalorder %s17, 1
      %p61 = por %p59, %p60
      %p63 = scmp.ne.s32.totalorder %s46, %s62
      %p64 = scmp.eq.s32.totalorder %s17, 0
      %p65 = por %p63, %p64
      %s66 = ssub.s32 %s20, %s29
      %s67 = ssub.s32 %s19, %s33
      %s68 = sor.u32 %s66, %s67
      %p69 = scmp.eq.s32.totalorder %s68, 0
      %s71 = sadd.s32 %s70, 1
      %s72 = scalar_select %p69, %s70, %s71
      %p75 = pneg %p69
      %p76 = scmp.eq.s32.totalorder %s11, 1
      %p77 = por %p75, %p76
      %p78 = scmp.ne.s32.totalorder %s70, %s73
      %p79 = scmp.eq.s32.totalorder %s11, 0
      %p80 = por %p78, %p79
      %p81 = scmp.ne.s32.totalorder %s70, %s73
      %p82 = scmp.eq.s32.totalorder %s16, 1
      %p83 = por %p81, %p82
      %p84 = scmp.ne.s32.totalorder %s73, %s74
      %p85 = scmp.eq.s32.totalorder %s16, 0
      %p86 = por %p84, %p85
      %p87 = scmp.ne.s32.totalorder %s73, %s74
      %p88 = scmp.eq.s32.totalorder %s17, 1
      %p89 = por %p87, %p88
      %p91 = scmp.ne.s32.totalorder %s74, %s90
      %p92 = scmp.eq.s32.totalorder %s17, 0
      %p93 = por %p91, %p92
      %s94 = ssub.s32 %s18, %s37
      %s95 = ssub.s32 %s19, %s33
      %s96 = sor.u32 %s94, %s95
      %p97 = scmp.eq.s32.totalorder %s96, 0
      %s99 = sadd.s32 %s98, 1
      %s100 = scalar_select %p97, %s98, %s99
      %p103 = pneg %p97
      %p104 = scmp.eq.s32.totalorder %s11, 1
      %p105 = por %p103, %p104
      %p106 = scmp.ne.s32.totalorder %s98, %s101
      %p107 = scmp.eq.s32.totalorder %s11, 0
      %p108 = por %p106, %p107
      %p109 = scmp.ne.s32.totalorder %s98, %s101
      %p110 = scmp.eq.s32.totalorder %s16, 1
      %p111 = por %p109, %p110
      %p112 = scmp.ne.s32.totalorder %s101, %s102
      %p113 = scmp.eq.s32.totalorder %s16, 0
      %p114 = por %p112, %p113
      %p115 = scmp.ne.s32.totalorder %s101, %s102
      %p116 = scmp.eq.s32.totalorder %s17, 1
      %p117 = por %p115, %p116
      %p119 = scmp.ne.s32.totalorder %s102, %s118
      %p120 = scmp.eq.s32.totalorder %s17, 0
      %p121 = por %p119, %p120
      %p122 = scmp.le.s32.totalorder 1, %s11
      %p123 = scmp.lt.s32.totalorder %s11, 3
      %p124 = pnand %p122, %p123
      %p125 = pneg %p124
      // Predicated region
      $region9: #{tpu_custom_call.1} parent=5 // pred_check
        _
      $region10: #{tpu_custom_call.1} parent=5 // pred_check_branch
        %127 = sbr.rel (%p124) target = $region12
      $region11: #{tpu_custom_call.1} parent=5 // pred_region
        %s128 = ssub.s32 %s11, 1
        // Predicated region
        $region13: #{tpu_custom_call.1} parent=11 // pred_check
          %p129 = pneg %p58
        $region14: #{tpu_custom_call.1} parent=11 // pred_check_branch
          %131 = sbr.rel (%p129) target = $region16
        $region15: #{tpu_custom_call.1} parent=11 // pred_region
          %s132 = smul.u32 24, %s21
          %s133 = smul.u32 2, %s23
          %p134 = scmp.lt.s32.totalorder %s132, 23
          %s135 = scalar_select %p134, %s132, 23
          %p136 = scmp.lt.s32.totalorder %s133, 1
          %s137 = scalar_select %p136, %s133, 1
          %s138 = smul.addr %s135, 2
          %s139 = sadd.s32 %s137, %s138
          %s140 = smul.addr %s139, 8
          %s141 = scalar_lea.vmem %s0, %s140
          %s142 = smul.u32 24, %s21
          %s143 = smul.u32 2, %s23
        $region16: #{tpu_custom_call.1} parent=11 // pred_fallthru
          _
      $region12: #{tpu_custom_call.1} parent=5 // pred_fallthru
        _
      %p144 = scmp.lt.s32.totalorder %s11, 2
      // Predicated region
      $region17: #{tpu_custom_call.1} parent=5 // pred_check
        %p145 = pneg %p144
      $region18: #{tpu_custom_call.1} parent=5 // pred_check_branch
        %147 = sbr.rel (%p145) target = $region20
      $region19: #{tpu_custom_call.1} parent=5 // pred_region
        // Predicated region
        $region21: #{tpu_custom_call.1} parent=19 // pred_check
          %p148 = pneg %p80
        $region22: #{tpu_custom_call.1} parent=19 // pred_check_branch
          %150 = sbr.rel (%p148) target = $region24
        $region23: #{tpu_custom_call.1} parent=19 // pred_region
          %s151 = sand.u32 %s70, 1
          %s152 = sand.u32 %s70, 1
          %s153 = smul.addr %s152, 152
          %s154 = scalar_lea.vmem [#allocation3], %s153
          %s155 = smul.u32 19, %s20
          %s156 = smul.addr %s155, 2
          %s157 = sadd.s32 %s19, %s156
          %s158 = smul.addr %s157, 8
          %s159 = scalar_lea.vmem %s1, %s158
          // Predicated region
          $region25: #{tpu_custom_call.1} parent=23 // pred_check
            _
          $region26: #{tpu_custom_call.1} parent=23 // pred_check_branch
            %161 = sbr.rel (0) target = $region28
          $region27: #{tpu_custom_call.1} parent=23 // pred_region
            // Predicated region
            $region29: #{tpu_custom_call.1} parent=27 // pred_check
              _
            $region30: #{tpu_custom_call.1} parent=27 // pred_check_branch
              %163 = sbr.rel (0) target = $region32
            $region31: #{tpu_custom_call.1} parent=27 // pred_region
              // Predicated region
              $region44: #{tpu_custom_call.1} parent=31 // pred_check
                _
              $region45: #{tpu_custom_call.1} parent=31 // pred_check_branch
                %214 = sbr.rel (0) target = $region47
              $region46: #{tpu_custom_call.1} parent=31 // pred_region
                loop: start=0, step=1, limit=1
                $region48: #{tpu_custom_call.1} parent=46 // loop_pre_header
                  _
                $region49: #{tpu_custom_call.1} parent=46 // loop_header
                  %s216 = sphi 0, %s220
                  %p217 = scmp.ge.s32.totalorder %s216, 1
                  %s221 = sphi %s159, %s159
                  %s222 = sphi %s154, %s154
                $region50: #{tpu_custom_call.1} parent=46 // loop_header_branch
                  %219 = sbr.rel (%p217) target = $region54
                $region51: #{tpu_custom_call.1} parent=46 // loop_body
                  %v223 = vld [vmem:[%s221] sm:$0xff]
                  %224 = vst [vmem:[%s222] sm:$0xff] %v223
                  %v225 = vld [vmem:[%s221 + $0x10] sm:$0xff]
                  %226 = vst [vmem:[%s222 + $0x8] sm:$0xff] %v225
                  %v227 = vld [vmem:[%s221 + $0x20] sm:$0xff]
                  %228 = vst [vmem:[%s222 + $0x10] sm:$0xff] %v227
                  %v229 = vld [vmem:[%s221 + $0x30] sm:$0xff]
                  %230 = vst [vmem:[%s222 + $0x18] sm:$0xff] %v229
                  %v231 = vld [vmem:[%s221 + $0x40] sm:$0xff]
                  %232 = vst [vmem:[%s222 + $0x20] sm:$0xff] %v231
                  %v233 = vld [vmem:[%s221 + $0x50] sm:$0xff]
                  %234 = vst [vmem:[%s222 + $0x28] sm:$0xff] %v233
                  %v235 = vld [vmem:[%s221 + $0x60] sm:$0xff]
                  %236 = vst [vmem:[%s222 + $0x30] sm:$0xff] %v235
                  %v237 = vld [vmem:[%s221 + $0x70] sm:$0xff]
                  %238 = vst [vmem:[%s222 + $0x38] sm:$0xff] %v237
                  %v239 = vld [vmem:[%s221 + $0x80] sm:$0xff]
                  %240 = vst [vmem:[%s222 + $0x40] sm:$0xff] %v239
                  %v241 = vld [vmem:[%s221 + $0x90] sm:$0xff]
                  %242 = vst [vmem:[%s222 + $0x48] sm:$0xff] %v241
                  %v243 = vld [vmem:[%s221 + $0xa0] sm:$0xff]
                  %244 = vst [vmem:[%s222 + $0x50] sm:$0xff] %v243
                  %v245 = vld [vmem:[%s221 + $0xb0] sm:$0xff]
                  %246 = vst [vmem:[%s222 + $0x58] sm:$0xff] %v245
                  %v247 = vld [vmem:[%s221 + $0xc0] sm:$0xff]
                  %248 = vst [vmem:[%s222 + $0x60] sm:$0xff] %v247
                  %v249 = vld [vmem:[%s221 + $0xd0] sm:$0xff]
                  %250 = vst [vmem:[%s222 + $0x68] sm:$0xff] %v249
                  %v251 = vld [vmem:[%s221 + $0xe0] sm:$0xff]
                  %252 = vst [vmem:[%s222 + $0x70] sm:$0xff] %v251
                  %v253 = vld [vmem:[%s221 + $0xf0] sm:$0xff]
                  %254 = vst [vmem:[%s222 + $0x78] sm:$0xff] %v253
                  %v255 = vld [vmem:[%s221 + $0x100] sm:$0xff]
                  %256 = vst [vmem:[%s222 + $0x80] sm:$0xff] %v255
                  %v257 = vld [vmem:[%s221 + $0x110] sm:$0xff]
                  %258 = vst [vmem:[%s222 + $0x88] sm:$0xff] %v257
                  %v259 = vld [vmem:[%s221 + $0x120] sm:$0xff]
                  %260 = vst [vmem:[%s222 + $0x90] sm:$0xff] %v259
                $region52: #{tpu_custom_call.1} parent=46 // loop_footer
                  %s220 = sadd.s32 1, %s216
                $region53: #{tpu_custom_call.1} parent=46 // loop_footer_branch
                  %215 = sbr.rel target = $region49
                $region54: #{tpu_custom_call.1} parent=46 // loop_exit
                  _
              $region47: #{tpu_custom_call.1} parent=31 // pred_fallthru
                _
              // Predicated region
              $region55: #{tpu_custom_call.1} parent=31 // pred_check
                _
              $region56: #{tpu_custom_call.1} parent=31 // pred_check_branch
                %262 = sbr.rel target = $region58
              $region57: #{tpu_custom_call.1} parent=31 // pred_region
                _
              $region58: #{tpu_custom_call.1} parent=31 // pred_fallthru
                _
            $region32: #{tpu_custom_call.1} parent=27 // pred_fallthru
              _
            // Predicated region
            $region33: #{tpu_custom_call.1} parent=27 // pred_check
              _
            $region34: #{tpu_custom_call.1} parent=27 // pred_check_branch
              %165 = sbr.rel target = $region36
            $region35: #{tpu_custom_call.1} parent=27 // pred_region
              loop: start=0, step=1, limit=1
              $region37: #{tpu_custom_call.1} parent=35 // loop_pre_header
                _
              $region38: #{tpu_custom_call.1} parent=35 // loop_header
                %s168 = sphi 0, %s172
                %p169 = scmp.ge.s32.totalorder %s168, 1
                %s173 = sphi %s159, %s159
                %s174 = sphi %s154, %s154
              $region39: #{tpu_custom_call.1} parent=35 // loop_header_branch
                %171 = sbr.rel (%p169) target = $region43
              $region40: #{tpu_custom_call.1} parent=35 // loop_body
                %v175 = vld [vmem:[%s173] sm:$0xff]
                %176 = vst [vmem:[%s174] sm:$0xff] %v175
                %v177 = vld [vmem:[%s173 + $0x10] sm:$0xff]
                %178 = vst [vmem:[%s174 + $0x8] sm:$0xff] %v177
                %v179 = vld [vmem:[%s173 + $0x20] sm:$0xff]
                %180 = vst [vmem:[%s174 + $0x10] sm:$0xff] %v179
                %v181 = vld [vmem:[%s173 + $0x30] sm:$0xff]
                %182 = vst [vmem:[%s174 + $0x18] sm:$0xff] %v181
                %v183 = vld [vmem:[%s173 + $0x40] sm:$0xff]
                %184 = vst [vmem:[%s174 + $0x20] sm:$0xff] %v183
                %v185 = vld [vmem:[%s173 + $0x50] sm:$0xff]
                %186 = vst [vmem:[%s174 + $0x28] sm:$0xff] %v185
                %v187 = vld [vmem:[%s173 + $0x60] sm:$0xff]
                %188 = vst [vmem:[%s174 + $0x30] sm:$0xff] %v187
                %v189 = vld [vmem:[%s173 + $0x70] sm:$0xff]
                %190 = vst [vmem:[%s174 + $0x38] sm:$0xff] %v189
                %v191 = vld [vmem:[%s173 + $0x80] sm:$0xff]
                %192 = vst [vmem:[%s174 + $0x40] sm:$0xff] %v191
                %v193 = vld [vmem:[%s173 + $0x90] sm:$0xff]
                %194 = vst [vmem:[%s174 + $0x48] sm:$0xff] %v193
                %v195 = vld [vmem:[%s173 + $0xa0] sm:$0xff]
                %196 = vst [vmem:[%s174 + $0x50] sm:$0xff] %v195
                %v197 = vld [vmem:[%s173 + $0xb0] sm:$0xff]
                %198 = vst [vmem:[%s174 + $0x58] sm:$0xff] %v197
                %v199 = vld [vmem:[%s173 + $0xc0] sm:$0xff]
                %200 = vst [vmem:[%s174 + $0x60] sm:$0xff] %v199
                %v201 = vld [vmem:[%s173 + $0xd0] sm:$0xff]
                %202 = vst [vmem:[%s174 + $0x68] sm:$0xff] %v201
                %v203 = vld [vmem:[%s173 + $0xe0] sm:$0xff]
                %204 = vst [vmem:[%s174 + $0x70] sm:$0xff] %v203
                %v205 = vld [vmem:[%s173 + $0xf0] sm:$0xff]
                %206 = vst [vmem:[%s174 + $0x78] sm:$0xff] %v205
                %v207 = vld [vmem:[%s173 + $0x100] sm:$0xff]
                %208 = vst [vmem:[%s174 + $0x80] sm:$0xff] %v207
                %v209 = vld [vmem:[%s173 + $0x110] sm:$0xff]
                %210 = vst [vmem:[%s174 + $0x88] sm:$0xff] %v209
                %v211 = vld [vmem:[%s173 + $0x120] sm:$0xff]
                %212 = vst [vmem:[%s174 + $0x90] sm:$0xff] %v211
              $region41: #{tpu_custom_call.1} parent=35 // loop_footer
                %s172 = sadd.s32 1, %s168
              $region42: #{tpu_custom_call.1} parent=35 // loop_footer_branch
                %167 = sbr.rel target = $region38
              $region43: #{tpu_custom_call.1} parent=35 // loop_exit
                _
            $region36: #{tpu_custom_call.1} parent=27 // pred_fallthru
              _
          $region28: #{tpu_custom_call.1} parent=23 // pred_fallthru
            _
          %263 = vnop
        $region24: #{tpu_custom_call.1} parent=19 // pred_fallthru
          _
      $region20: #{tpu_custom_call.1} parent=5 // pred_fallthru
        _
      %p264 = scmp.le.s32.totalorder 1, %s11
      %p265 = scmp.lt.s32.totalorder %s11, 3
      %p266 = pnand %p264, %p265
      %p267 = pneg %p266
      // Predicated region
      $region59: #{tpu_custom_call.1} parent=5 // pred_check
        _
      $region60: #{tpu_custom_call.1} parent=5 // pred_check_branch
        %269 = sbr.rel (%p266) target = $region62
      $region61: #{tpu_custom_call.1} parent=5 // pred_region
        %s270 = ssub.s32 %s11, 1
        %s271 = sand.u32 %s73, 1
        %s272 = sand.u32 %s73, 1
        %s273 = smul.addr %s272, 152
        %s274 = scalar_lea.vmem [#allocation3], %s273
        // Predicated region
        $region63: #{tpu_custom_call.1} parent=61 // pred_check
          %p275 = pneg %p86
        $region64: #{tpu_custom_call.1} parent=61 // pred_check_branch
          %277 = sbr.rel (%p275) target = $region66
        $region65: #{tpu_custom_call.1} parent=61 // pred_region
          _
        $region66: #{tpu_custom_call.1} parent=61 // pred_fallthru
          _
        %s278 = smul.u32 24, %s21
        %s279 = smul.u32 2, %s23
        %p280 = scmp.lt.s32.totalorder %s278, 23
        %s281 = scalar_select %p280, %s278, 23
        %p282 = scmp.lt.s32.totalorder %s279, 1
        %s283 = scalar_select %p282, %s279, 1
        %s284 = smul.addr %s281, 2
        %s285 = sadd.s32 %s283, %s284
        %s286 = smul.addr %s285, 8
        %s287 = scalar_lea.vmem %s0, %s286
        %p288 = pneg %p58
        %p289 = pneg %p55
        %s290 = sand.u32 %s73, 1
        %s291 = sand.u32 %s73, 1
        %s292 = smul.addr %s291, 152
        %s293 = scalar_lea.vmem [#allocation3], %s292
        %p294 = pneg %p86
        %p295 = pneg %p83
        %p296 = pneg %p114
        %p297 = pneg %p111
        %s298 = sand.u32 %s101, 1
        %s299 = scalar_lea.sflag [#allocation5], %s298
        %s300 = sand.u32 %s101, 1
        %s301 = smul.addr %s300, 192
        %s302 = scalar_lea.vmem [#allocation4], %s301
        %s303 = smul.u32 24, %s21
        %s304 = smul.u32 2, %s23
        %p305 = scmp.lt.s32.totalorder %s303, 23
        %s306 = scalar_select %p305, %s303, 23
        %p307 = scmp.lt.s32.totalorder %s304, 1
        %s308 = scalar_select %p307, %s304, 1
        %s309 = smul.addr %s306, 2
        %s310 = sadd.s32 %s308, %s309
        %s311 = smul.addr %s310, 8
        %s312 = scalar_lea.vmem %s0, %s311
        %s313 = smul.u32 24, %s21
        %s314 = smul.u32 2, %s23
        %s315 = smul.u32 19, %s23
        %s316 = smul.u32 24, %s21
        %p317 = scmp.eq.s32.totalorder %s23, 0
        // Predicated region
        $region67: #{tpu_custom_call.1} parent=61 // pred_check
          %p318 = pneg %p317
        $region68: #{tpu_custom_call.1} parent=61 // pred_check_branch
          %320 = sbr.rel (%p318) target = $region70
        $region69: #{tpu_custom_call.1} parent=61 // pred_region
          %321 = vst [vmem:[#allocation2] sm:$0xff] 0.0
          %322 = vst [vmem:[#allocation2 + $0x8] sm:$0xff] 0.0
          %323 = vst [vmem:[#allocation2 + $0x10] sm:$0xff] 0.0
          %324 = vst [vmem:[#allocation2 + $0x18] sm:$0xff] 0.0
          %325 = vst [vmem:[#allocation2 + $0x20] sm:$0xff] 0.0
          %326 = vst [vmem:[#allocation2 + $0x28] sm:$0xff] 0.0
          %327 = vst [vmem:[#allocation2 + $0x30] sm:$0xff] 0.0
          %328 = vst [vmem:[#allocation2 + $0x38] sm:$0xff] 0.0
          %329 = vst [vmem:[#allocation2 + $0x40] sm:$0xff] 0.0
          %330 = vst [vmem:[#allocation2 + $0x48] sm:$0xff] 0.0
          %331 = vst [vmem:[#allocation2 + $0x50] sm:$0xff] 0.0
          %332 = vst [vmem:[#allocation2 + $0x58] sm:$0xff] 0.0
          %333 = vst [vmem:[#allocation2 + $0x60] sm:$0xff] 0.0
          %334 = vst [vmem:[#allocation2 + $0x68] sm:$0xff] 0.0
          %335 = vst [vmem:[#allocation2 + $0x70] sm:$0xff] 0.0
          %336 = vst [vmem:[#allocation2 + $0x78] sm:$0xff] 0.0
          %337 = vst [vmem:[#allocation2 + $0x80] sm:$0xff] 0.0
          %338 = vst [vmem:[#allocation2 + $0x88] sm:$0xff] 0.0
          %339 = vst [vmem:[#allocation2 + $0x90] sm:$0xff] 0.0
          %340 = vst [vmem:[#allocation2 + $0x98] sm:$0xff] 0.0
          %341 = vst [vmem:[#allocation2 + $0xa0] sm:$0xff] 0.0
          %342 = vst [vmem:[#allocation2 + $0xa8] sm:$0xff] 0.0
          %343 = vst [vmem:[#allocation2 + $0xb0] sm:$0xff] 0.0
          %344 = vst [vmem:[#allocation2 + $0xb8] sm:$0xff] 0.0
        $region70: #{tpu_custom_call.1} parent=61 // pred_fallthru
          _
        %v345 = vld [vmem:[%s312] sm:$0xff]
        %v346 = vld [vmem:[%s312 + $0x8] sm:$0xff]
        %v347 = vld [vmem:[%s312 + $0x10] sm:$0xff]
        %v348 = vld [vmem:[%s312 + $0x18] sm:$0xff]
        %v349 = vld [vmem:[%s312 + $0x20] sm:$0xff]
        %v350 = vld [vmem:[%s312 + $0x28] sm:$0xff]
        %v351 = vld [vmem:[%s312 + $0x30] sm:$0xff]
        %v352 = vld [vmem:[%s312 + $0x38] sm:$0xff]
        %v353 = vld [vmem:[%s312 + $0x40] sm:$0xff]
        %v354 = vld [vmem:[%s312 + $0x48] sm:$0xff]
        %v355 = vld [vmem:[%s312 + $0x50] sm:$0xff]
        %v356 = vld [vmem:[%s312 + $0x58] sm:$0xff]
        %v357 = vld [vmem:[%s312 + $0x60] sm:$0xff]
        %v358 = vld [vmem:[%s312 + $0x68] sm:$0xff]
        %v359 = vld [vmem:[%s312 + $0x70] sm:$0xff]
        %v360 = vld [vmem:[%s312 + $0x78] sm:$0xff]
        %v361 = vld [vmem:[%s312 + $0x80] sm:$0xff]
        %v362 = vld [vmem:[%s312 + $0x88] sm:$0xff]
        %v363 = vld [vmem:[%s312 + $0x90] sm:$0xff]
        %v364 = vld [vmem:[%s312 + $0x98] sm:$0xff]
        %v365 = vld [vmem:[%s312 + $0xa0] sm:$0xff]
        %v366 = vld [vmem:[%s312 + $0xa8] sm:$0xff]
        %v367 = vld [vmem:[%s312 + $0xb0] sm:$0xff]
        %v368 = vld [vmem:[%s312 + $0xb8] sm:$0xff]
        %v369 = vld [vmem:[%s312 + $0xc0] sm:$0xff]
        %v370 = vld [vmem:[%s312 + $0xc8] sm:$0xff]
        %v371 = vld [vmem:[%s312 + $0xd0] sm:$0xff]
        %v372 = vld [vmem:[%s312 + $0xd8] sm:$0xff]
        %v373 = vld [vmem:[%s312 + $0xe0] sm:$0xff]
        %v374 = vld [vmem:[%s312 + $0xe8] sm:$0xff]
        %v375 = vld [vmem:[%s312 + $0xf0] sm:$0xff]
        %v376 = vld [vmem:[%s312 + $0xf8] sm:$0xff]
        %v377 = vld [vmem:[%s312 + $0x100] sm:$0xff]
        %v378 = vld [vmem:[%s312 + $0x108] sm:$0xff]
        %v379 = vld [vmem:[%s312 + $0x110] sm:$0xff]
        %v380 = vld [vmem:[%s312 + $0x118] sm:$0xff]
        %v381 = vld [vmem:[%s312 + $0x120] sm:$0xff]
        %v382 = vld [vmem:[%s312 + $0x128] sm:$0xff]
        %v383 = vld [vmem:[%s312 + $0x130] sm:$0xff]
        %v384 = vld [vmem:[%s312 + $0x138] sm:$0xff]
        %v385 = vld [vmem:[%s312 + $0x140] sm:$0xff]
        %v386 = vld [vmem:[%s312 + $0x148] sm:$0xff]
        %v387 = vld [vmem:[%s312 + $0x150] sm:$0xff]
        %v388 = vld [vmem:[%s312 + $0x158] sm:$0xff]
        %v389 = vld [vmem:[%s312 + $0x160] sm:$0xff]
        %v390 = vld [vmem:[%s312 + $0x168] sm:$0xff]
        %v391 = vld [vmem:[%s312 + $0x170] sm:$0xff]
        %v392 = vld [vmem:[%s312 + $0x178] sm:$0xff]
        %v393 = vld [vmem:[%s274] sm:$0xff]
        %v394 = vld [vmem:[%s274 + $0x8] sm:$0xff]
        %v395 = vld [vmem:[%s274 + $0x10] sm:$0xff]
        %v396 = vld [vmem:[%s274 + $0x18] sm:$0xff]
        %v397 = vld [vmem:[%s274 + $0x20] sm:$0xff]
        %v398 = vld [vmem:[%s274 + $0x28] sm:$0xff]
        %v399 = vld [vmem:[%s274 + $0x30] sm:$0xff]
        %v400 = vld [vmem:[%s274 + $0x38] sm:$0xff]
        %v401 = vld [vmem:[%s274 + $0x40] sm:$0xff]
        %v402 = vld [vmem:[%s274 + $0x48] sm:$0xff]
        %v403 = vld [vmem:[%s274 + $0x50] sm:$0xff]
        %v404 = vld [vmem:[%s274 + $0x58] sm:$0xff]
        %v405 = vld [vmem:[%s274 + $0x60] sm:$0xff]
        %v406 = vld [vmem:[%s274 + $0x68] sm:$0xff]
        %v407 = vld [vmem:[%s274 + $0x70] sm:$0xff]
        %v408 = vld [vmem:[%s274 + $0x78] sm:$0xff]
        %v409 = vld [vmem:[%s274 + $0x80] sm:$0xff]
        %v410 = vld [vmem:[%s274 + $0x88] sm:$0xff]
        %v411 = vld [vmem:[%s274 + $0x90] sm:$0xff]
        %v412 = vmul.f32 %v345, %v345
        %v413 = vmul.f32 %v346, %v346
        %v414 = vmul.f32 %v347, %v347
        %v415 = vmul.f32 %v348, %v348
        %v416 = vmul.f32 %v349, %v349
        %v417 = vmul.f32 %v350, %v350
        %v418 = vmul.f32 %v351, %v351
        %v419 = vmul.f32 %v352, %v352
        %v420 = vmul.f32 %v353, %v353
        %v421 = vmul.f32 %v354, %v354
        %v422 = vmul.f32 %v355, %v355
        %v423 = vmul.f32 %v356, %v356
        %v424 = vmul.f32 %v357, %v357
        %v425 = vmul.f32 %v358, %v358
        %v426 = vmul.f32 %v359, %v359
        %v427 = vmul.f32 %v360, %v360
        %v428 = vmul.f32 %v361, %v361
        %v429 = vmul.f32 %v362, %v362
        %v430 = vmul.f32 %v363, %v363
        %v431 = vmul.f32 %v364, %v364
        %v432 = vmul.f32 %v365, %v365
        %v433 = vmul.f32 %v366, %v366
        %v434 = vmul.f32 %v367, %v367
        %v435 = vmul.f32 %v368, %v368
        %v436 = vmul.f32 %v369, %v369
        %v437 = vmul.f32 %v370, %v370
        %v438 = vmul.f32 %v371, %v371
        %v439 = vmul.f32 %v372, %v372
        %v440 = vmul.f32 %v373, %v373
        %v441 = vmul.f32 %v374, %v374
        %v442 = vmul.f32 %v375, %v375
        %v443 = vmul.f32 %v376, %v376
        %v444 = vmul.f32 %v377, %v377
        %v445 = vmul.f32 %v378, %v378
        %v446 = vmul.f32 %v379, %v379
        %v447 = vmul.f32 %v380, %v380
        %v448 = vmul.f32 %v381, %v381
        %v449 = vmul.f32 %v382, %v382
        %v450 = vmul.f32 %v383, %v383
        %v451 = vmul.f32 %v384, %v384
        %v452 = vmul.f32 %v385, %v385
        %v453 = vmul.f32 %v386, %v386
        %v454 = vmul.f32 %v387, %v387
        %v455 = vmul.f32 %v388, %v388
        %v456 = vmul.f32 %v389, %v389
        %v457 = vmul.f32 %v390, %v390
        %v458 = vmul.f32 %v391, %v391
        %v459 = vmul.f32 %v392, %v392
        %vm460 = vcmask 195584
        %v461 = vsel %vm460, %v413, 0.0
        %v462 = vadd.f32 %v412, %v461
        %463 = vadd.xlane.f32.xlu0 %v462
        %v464 = vpop.xlane.xlu0 %463
        %v465 = vsel %vm460, %v415, 0.0
        %v466 = vadd.f32 %v414, %v465
        %467 = vadd.xlane.f32.xlu0 %v466
        %v468 = vpop.xlane.xlu0 %467
        %v469 = vsel %vm460, %v417, 0.0
        %v470 = vadd.f32 %v416, %v469
        %471 = vadd.xlane.f32.xlu0 %v470
        %v472 = vpop.xlane.xlu0 %471
        %v473 = vsel %vm460, %v419, 0.0
        %v474 = vadd.f32 %v418, %v473
        %475 = vadd.xlane.f32.xlu0 %v474
        %v476 = vpop.xlane.xlu0 %475
        %v477 = vsel %vm460, %v421, 0.0
        %v478 = vadd.f32 %v420, %v477
        %479 = vadd.xlane.f32.xlu0 %v478
        %v480 = vpop.xlane.xlu0 %479
        %v481 = vsel %vm460, %v423, 0.0
        %v482 = vadd.f32 %v422, %v481
        %483 = vadd.xlane.f32.xlu0 %v482
        %v484 = vpop.xlane.xlu0 %483
        %v485 = vsel %vm460, %v425, 0.0
        %v486 = vadd.f32 %v424, %v485
        %487 = vadd.xlane.f32.xlu0 %v486
        %v488 = vpop.xlane.xlu0 %487
        %v489 = vsel %vm460, %v427, 0.0
        %v490 = vadd.f32 %v426, %v489
        %491 = vadd.xlane.f32.xlu0 %v490
        %v492 = vpop.xlane.xlu0 %491
        %v493 = vsel %vm460, %v429, 0.0
        %v494 = vadd.f32 %v428, %v493
        %495 = vadd.xlane.f32.xlu0 %v494
        %v496 = vpop.xlane.xlu0 %495
        %v497 = vsel %vm460, %v431, 0.0
        %v498 = vadd.f32 %v430, %v497
        %499 = vadd.xlane.f32.xlu0 %v498
        %v500 = vpop.xlane.xlu0 %499
        %v501 = vsel %vm460, %v433, 0.0
        %v502 = vadd.f32 %v432, %v501
        %503 = vadd.xlane.f32.xlu0 %v502
        %v504 = vpop.xlane.xlu0 %503
        %v505 = vsel %vm460, %v435, 0.0
        %v506 = vadd.f32 %v434, %v505
        %507 = vadd.xlane.f32.xlu0 %v506
        %v508 = vpop.xlane.xlu0 %507
        %v509 = vsel %vm460, %v437, 0.0
        %v510 = vadd.f32 %v436, %v509
        %511 = vadd.xlane.f32.xlu0 %v510
        %v512 = vpop.xlane.xlu0 %511
        %v513 = vsel %vm460, %v439, 0.0
        %v514 = vadd.f32 %v438, %v513
        %515 = vadd.xlane.f32.xlu0 %v514
        %v516 = vpop.xlane.xlu0 %515
        %v517 = vsel %vm460, %v441, 0.0
        %v518 = vadd.f32 %v440, %v517
        %519 = vadd.xlane.f32.xlu0 %v518
        %v520 = vpop.xlane.xlu0 %519
        %v521 = vsel %vm460, %v443, 0.0
        %v522 = vadd.f32 %v442, %v521
        %523 = vadd.xlane.f32.xlu0 %v522
        %v524 = vpop.xlane.xlu0 %523
        %v525 = vsel %vm460, %v445, 0.0
        %v526 = vadd.f32 %v444, %v525
        %527 = vadd.xlane.f32.xlu0 %v526
        %v528 = vpop.xlane.xlu0 %527
        %v529 = vsel %vm460, %v447, 0.0
        %v530 = vadd.f32 %v446, %v529
        %531 = vadd.xlane.f32.xlu0 %v530
        %v532 = vpop.xlane.xlu0 %531
        %v533 = vsel %vm460, %v449, 0.0
        %v534 = vadd.f32 %v448, %v533
        %535 = vadd.xlane.f32.xlu0 %v534
        %v536 = vpop.xlane.xlu0 %535
        %v537 = vsel %vm460, %v451, 0.0
        %v538 = vadd.f32 %v450, %v537
        %539 = vadd.xlane.f32.xlu0 %v538
        %v540 = vpop.xlane.xlu0 %539
        %v541 = vsel %vm460, %v453, 0.0
        %v542 = vadd.f32 %v452, %v541
        %543 = vadd.xlane.f32.xlu0 %v542
        %v544 = vpop.xlane.xlu0 %543
        %v545 = vsel %vm460, %v455, 0.0
        %v546 = vadd.f32 %v454, %v545
        %547 = vadd.xlane.f32.xlu0 %v546
        %v548 = vpop.xlane.xlu0 %547
        %v549 = vsel %vm460, %v457, 0.0
        %v550 = vadd.f32 %v456, %v549
        %551 = vadd.xlane.f32.xlu0 %v550
        %v552 = vpop.xlane.xlu0 %551
        %v553 = vsel %vm460, %v459, 0.0
        %v554 = vadd.f32 %v458, %v553
        %555 = vadd.xlane.f32.xlu0 %v554
        %v556 = vpop.xlane.xlu0 %555
        %v557 = vmul.f32 %v393, %v393
        %v558 = vmul.f32 %v394, %v394
        %v559 = vmul.f32 %v395, %v395
        %v560 = vmul.f32 %v396, %v396
        %v561 = vmul.f32 %v397, %v397
        %v562 = vmul.f32 %v398, %v398
        %v563 = vmul.f32 %v399, %v399
        %v564 = vmul.f32 %v400, %v400
        %v565 = vmul.f32 %v401, %v401
        %v566 = vmul.f32 %v402, %v402
        %v567 = vmul.f32 %v403, %v403
        %v568 = vmul.f32 %v404, %v404
        %v569 = vmul.f32 %v405, %v405
        %v570 = vmul.f32 %v406, %v406
        %v571 = vmul.f32 %v407, %v407
        %v572 = vmul.f32 %v408, %v408
        %v573 = vmul.f32 %v409, %v409
        %v574 = vmul.f32 %v410, %v410
        %v575 = vmul.f32 %v411, %v411
        %v576 = vadd.f32 %v557, %v558
        %v577 = vadd.f32 %v576, %v559
        %v578 = vadd.f32 %v577, %v560
        %v579 = vadd.f32 %v578, %v561
        %v580 = vadd.f32 %v579, %v562
        %v581 = vadd.f32 %v580, %v563
        %v582 = vadd.f32 %v581, %v564
        %v583 = vadd.f32 %v582, %v565
        %v584 = vadd.f32 %v583, %v566
        %v585 = vadd.f32 %v584, %v567
        %v586 = vadd.f32 %v585, %v568
        %v587 = vadd.f32 %v586, %v569
        %v588 = vadd.f32 %v587, %v570
        %v589 = vadd.f32 %v588, %v571
        %v590 = vadd.f32 %v589, %v572
        %v591 = vadd.f32 %v590, %v573
        %v592 = vadd.f32 %v591, %v574
        %v593 = vadd.f32 %v592, %v575
        %v594 = vrot.slane %v593, 4
        %v595 = vadd.f32 %v593, %v594
        %v596 = vrot.slane %v595, 2
        %v597 = vadd.f32 %v595, %v596
        %v598 = vrot.slane %v597, 1
        %v599 = vadd.f32 %v597, %v598
        %v601 = vsel %vm460, %v346, 0
        %v604 = vsel %vm460, %v348, 0
        %v607 = vsel %vm460, %v350, 0
        %v610 = vsel %vm460, %v352, 0
        %v613 = vsel %vm460, %v354, 0
        %v616 = vsel %vm460, %v356, 0
        %v619 = vsel %vm460, %v358, 0
        %v622 = vsel %vm460, %v360, 0
        %v625 = vsel %vm460, %v362, 0
        %v628 = vsel %vm460, %v364, 0
        %v631 = vsel %vm460, %v366, 0
        %v634 = vsel %vm460, %v368, 0
        %v637 = vsel %vm460, %v370, 0
        %v640 = vsel %vm460, %v372, 0
        %v643 = vsel %vm460, %v374, 0
        %v646 = vsel %vm460, %v376, 0
        %v649 = vsel %vm460, %v378, 0
        %v652 = vsel %vm460, %v380, 0
        %v655 = vsel %vm460, %v382, 0
        %v658 = vsel %vm460, %v384, 0
        %v661 = vsel %vm460, %v386, 0
        %v664 = vsel %vm460, %v388, 0
        %v667 = vsel %vm460, %v390, 0
        %v670 = vsel %vm460, %v392, 0
        %672 = vmatprep.subr.mxu0 0.0
        %673 = vmatpush1.msra.mxu0 %v393
        %674 = vmatprep.subr.mxu0 0.0
        %675 = vmatpush1.msra.mxu0 %v394
        %676 = vmatprep.subr.mxu0 0.0
        %677 = vmatpush1.msra.mxu0 %v395
        %678 = vmatprep.subr.mxu0 0.0
        %679 = vmatpush1.msra.mxu0 %v396
        %680 = vmatprep.subr.mxu0 0.0
        %681 = vmatpush1.msra.mxu0 %v397
        %682 = vmatprep.subr.mxu0 0.0
        %683 = vmatpush1.msra.mxu0 %v398
        %684 = vmatprep.subr.mxu0 0.0
        %685 = vmatpush1.msra.mxu0 %v399
        %686 = vmatprep.subr.mxu0 0.0
        %687 = vmatpush1.msra.mxu0 %v400
        %688 = vmatprep.subr.mxu0 0.0
        %689 = vmatpush1.msra.mxu0 %v401
        %690 = vmatprep.subr.mxu0 0.0
        %691 = vmatpush1.msra.mxu0 %v402
        %692 = vmatprep.subr.mxu0 0.0
        %693 = vmatpush1.msra.mxu0 %v403
        %694 = vmatprep.subr.mxu0 0.0
        %695 = vmatpush1.msra.mxu0 %v404
        %696 = vmatprep.subr.mxu0 0.0
        %697 = vmatpush1.msra.mxu0 %v405
        %698 = vmatprep.subr.mxu0 0.0
        %699 = vmatpush1.msra.mxu0 %v406
        %700 = vmatprep.subr.mxu0 0.0
        %701 = vmatpush1.msra.mxu0 %v407
        %702 = vmatprep.subr.mxu0 0.0
        %703 = vmatpush1.msra.mxu0 %v408
        %704 = vmatprep.subr.mxu0 0.0
        %705 = vmatpush1.msra.mxu0 %v409
        %706 = vmatprep.subr.mxu0 0.0
        %707 = vmatpush1.msra.mxu0 %v410
        %708 = vmatprep.subr.mxu0 0.0
        %709 = vmatpush1.msra.mxu0 %v411
        %710 = vmatprep.subr.mxu0 0.0
        %711 = vmatpush1.msra.mxu0 0.0
        %712 = vmatprep.subr.mxu0 0.0
        %713 = vmatpush1.msra.mxu0 0.0
        %714 = vmatprep.subr.mxu0 0.0
        %715 = vmatpush1.msra.mxu0 0.0
        %716 = vmatprep.subr.mxu0 0.0
        %717 = vmatpush1.msra.mxu0 0.0
        %718 = vmatprep.subr.mxu0 0.0
        %719 = vmatpush1.msra.mxu0 0.0
        %720 = vmatprep.subr.mxu0 0.0
        %721 = vmatpush1.msra.mxu0 0.0
        %722 = vmatprep.subr.mxu0 0.0
        %723 = vmatpush1.msra.mxu0 0.0
        %724 = vmatprep.subr.mxu0 0.0
        %725 = vmatpush1.msra.mxu0 0.0
        %726 = vmatprep.subr.mxu0 0.0
        %727 = vmatpush1.msra.mxu0 0.0
        %728 = vmatprep.subr.mxu0 0.0
        %729 = vmatpush1.msra.mxu0 0.0
        %730 = vmatprep.subr.mxu0 0.0
        %731 = vmatpush1.msra.mxu0 0.0
        %732 = vmatprep.subr.mxu0 0.0
        %733 = vmatpush1.msra.mxu0 0.0
        %734 = vmatprep.subr.mxu0 0.0
        %735 = vmatpush1.msra.mxu0 0.0
        %736 = vmatprep.mubr.f32.mxu0 %v601
        %737 = vmatmul.mubr.f32.gmra.mrb[0].mxu0 %v345
        %v738 = vpop.f32.mrb[0].mxu0
        %v739 = vadd.f32 0.0, %v738
        %v740 = vpop.f32.mrb[0].mxu0
        %741 = vmatprep.mubr.f32.mxu0 %v604
        %742 = vmatmul.mubr.f32.gmra.mrb[0].mxu0 %v347
        %v743 = vpop.f32.mrb[0].mxu0
        %v744 = vadd.f32 0.0, %v743
        %v745 = vpop.f32.mrb[0].mxu0
        %746 = vmatprep.mubr.f32.mxu0 %v607
        %747 = vmatmul.mubr.f32.gmra.mrb[0].mxu0 %v349
        %v748 = vpop.f32.mrb[0].mxu0
        %v749 = vadd.f32 0.0, %v748
        %v750 = vpop.f32.mrb[0].mxu0
        %751 = vmatprep.mubr.f32.mxu0 %v610
        %752 = vmatmul.mubr.f32.gmra.mrb[0].mxu0 %v351
        %v753 = vpop.f32.mrb[0].mxu0
        %v754 = vadd.f32 0.0, %v753
        %v755 = vpop.f32.mrb[0].mxu0
        %756 = vmatprep.mubr.f32.mxu0 %v613
        %757 = vmatmul.mubr.f32.gmra.mrb[0].mxu0 %v353
        %v758 = vpop.f32.mrb[0].mxu0
        %v759 = vadd.f32 0.0, %v758
        %v760 = vpop.f32.mrb[0].mxu0
        %761 = vmatprep.mubr.f32.mxu0 %v616
        %762 = vmatmul.mubr.f32.gmra.mrb[0].mxu0 %v355
        %v763 = vpop.f32.mrb[0].mxu0
        %v764 = vadd.f32 0.0, %v763
        %v765 = vpop.f32.mrb[0].mxu0
        %766 = vmatprep.mubr.f32.mxu0 %v619
        %767 = vmatmul.mubr.f32.gmra.mrb[0].mxu0 %v357
        %v768 = vpop.f32.mrb[0].mxu0
        %v769 = vadd.f32 0.0, %v768
        %v770 = vpop.f32.mrb[0].mxu0
        %771 = vmatprep.mubr.f32.mxu0 %v622
        %772 = vmatmul.mubr.f32.gmra.mrb[0].mxu0 %v359
        %v773 = vpop.f32.mrb[0].mxu0
        %v774 = vadd.f32 0.0, %v773
        %v775 = vpop.f32.mrb[0].mxu0
        %776 = vmatprep.mubr.f32.mxu0 %v625
        %777 = vmatmul.mubr.f32.gmra.mrb[0].mxu0 %v361
        %v778 = vpop.f32.mrb[0].mxu0
        %v779 = vadd.f32 0.0, %v778
        %v780 = vpop.f32.mrb[0].mxu0
        %781 = vmatprep.mubr.f32.mxu0 %v628
        %782 = vmatmul.mubr.f32.gmra.mrb[0].mxu0 %v363
        %v783 = vpop.f32.mrb[0].mxu0
        %v784 = vadd.f32 0.0, %v783
        %v785 = vpop.f32.mrb[0].mxu0
        %786 = vmatprep.mubr.f32.mxu0 %v631
        %787 = vmatmul.mubr.f32.gmra.mrb[0].mxu0 %v365
        %v788 = vpop.f32.mrb[0].mxu0
        %v789 = vadd.f32 0.0, %v788
        %v790 = vpop.f32.mrb[0].mxu0
        %791 = vmatprep.mubr.f32.mxu0 %v634
        %792 = vmatmul.mubr.f32.gmra.mrb[0].mxu0 %v367
        %v793 = vpop.f32.mrb[0].mxu0
        %v794 = vadd.f32 0.0, %v793
        %v795 = vpop.f32.mrb[0].mxu0
        %796 = vmatprep.mubr.f32.mxu0 %v637
        %797 = vmatmul.mubr.f32.gmra.mrb[0].mxu0 %v369
        %v798 = vpop.f32.mrb[0].mxu0
        %v799 = vadd.f32 0.0, %v798
        %v800 = vpop.f32.mrb[0].mxu0
        %801 = vmatprep.mubr.f32.mxu0 %v640
        %802 = vmatmul.mubr.f32.gmra.mrb[0].mxu0 %v371
        %v803 = vpop.f32.mrb[0].mxu0
        %v804 = vadd.f32 0.0, %v803
        %v805 = vpop.f32.mrb[0].mxu0
        %806 = vmatprep.mubr.f32.mxu0 %v643
        %807 = vmatmul.mubr.f32.gmra.mrb[0].mxu0 %v373
        %v808 = vpop.f32.mrb[0].mxu0
        %v809 = vadd.f32 0.0, %v808
        %v810 = vpop.f32.mrb[0].mxu0
        %811 = vmatprep.mubr.f32.mxu0 %v646
        %812 = vmatmul.mubr.f32.gmra.mrb[0].mxu0 %v375
        %v813 = vpop.f32.mrb[0].mxu0
        %v814 = vadd.f32 0.0, %v813
        %v815 = vpop.f32.mrb[0].mxu0
        %816 = vmatprep.mubr.f32.mxu0 %v649
        %817 = vmatmul.mubr.f32.gmra.mrb[0].mxu0 %v377
        %v818 = vpop.f32.mrb[0].mxu0
        %v819 = vadd.f32 0.0, %v818
        %v820 = vpop.f32.mrb[0].mxu0
        %821 = vmatprep.mubr.f32.mxu0 %v652
        %822 = vmatmul.mubr.f32.gmra.mrb[0].mxu0 %v379
        %v823 = vpop.f32.mrb[0].mxu0
        %v824 = vadd.f32 0.0, %v823
        %v825 = vpop.f32.mrb[0].mxu0
        %826 = vmatprep.mubr.f32.mxu0 %v655
        %827 = vmatmul.mubr.f32.gmra.mrb[0].mxu0 %v381
        %v828 = vpop.f32.mrb[0].mxu0
        %v829 = vadd.f32 0.0, %v828
        %v830 = vpop.f32.mrb[0].mxu0
        %831 = vmatprep.mubr.f32.mxu0 %v658
        %832 = vmatmul.mubr.f32.gmra.mrb[0].mxu0 %v383
        %v833 = vpop.f32.mrb[0].mxu0
        %v834 = vadd.f32 0.0, %v833
        %v835 = vpop.f32.mrb[0].mxu0
        %836 = vmatprep.mubr.f32.mxu0 %v661
        %837 = vmatmul.mubr.f32.gmra.mrb[0].mxu0 %v385
        %v838 = vpop.f32.mrb[0].mxu0
        %v839 = vadd.f32 0.0, %v838
        %v840 = vpop.f32.mrb[0].mxu0
        %841 = vmatprep.mubr.f32.mxu0 %v664
        %842 = vmatmul.mubr.f32.gmra.mrb[0].mxu0 %v387
        %v843 = vpop.f32.mrb[0].mxu0
        %v844 = vadd.f32 0.0, %v843
        %v845 = vpop.f32.mrb[0].mxu0
        %846 = vmatprep.mubr.f32.mxu0 %v667
        %847 = vmatmul.mubr.f32.gmra.mrb[0].mxu0 %v389
        %v848 = vpop.f32.mrb[0].mxu0
        %v849 = vadd.f32 0.0, %v848
        %v850 = vpop.f32.mrb[0].mxu0
        %851 = vmatprep.mubr.f32.mxu0 %v670
        %852 = vmatmul.mubr.f32.gmra.mrb[0].mxu0 %v391
        %v853 = vpop.f32.mrb[0].mxu0
        %v854 = vadd.f32 0.0, %v853
        %v855 = vpop.f32.mrb[0].mxu0
        %856 = vdwg.mxu0
        %v857 = vld [vmem:[#allocation2] sm:$0xff]
        %v858 = vld [vmem:[#allocation2 + $0x8] sm:$0xff]
        %v859 = vld [vmem:[#allocation2 + $0x10] sm:$0xff]
        %v860 = vld [vmem:[#allocation2 + $0x18] sm:$0xff]
        %v861 = vld [vmem:[#allocation2 + $0x20] sm:$0xff]
        %v862 = vld [vmem:[#allocation2 + $0x28] sm:$0xff]
        %v863 = vld [vmem:[#allocation2 + $0x30] sm:$0xff]
        %v864 = vld [vmem:[#allocation2 + $0x38] sm:$0xff]
        %v865 = vld [vmem:[#allocation2 + $0x40] sm:$0xff]
        %v866 = vld [vmem:[#allocation2 + $0x48] sm:$0xff]
        %v867 = vld [vmem:[#allocation2 + $0x50] sm:$0xff]
        %v868 = vld [vmem:[#allocation2 + $0x58] sm:$0xff]
        %v869 = vld [vmem:[#allocation2 + $0x60] sm:$0xff]
        %v870 = vld [vmem:[#allocation2 + $0x68] sm:$0xff]
        %v871 = vld [vmem:[#allocation2 + $0x70] sm:$0xff]
        %v872 = vld [vmem:[#allocation2 + $0x78] sm:$0xff]
        %v873 = vld [vmem:[#allocation2 + $0x80] sm:$0xff]
        %v874 = vld [vmem:[#allocation2 + $0x88] sm:$0xff]
        %v875 = vld [vmem:[#allocation2 + $0x90] sm:$0xff]
        %v876 = vld [vmem:[#allocation2 + $0x98] sm:$0xff]
        %v877 = vld [vmem:[#allocation2 + $0xa0] sm:$0xff]
        %v878 = vld [vmem:[#allocation2 + $0xa8] sm:$0xff]
        %v879 = vld [vmem:[#allocation2 + $0xb0] sm:$0xff]
        %v880 = vld [vmem:[#allocation2 + $0xb8] sm:$0xff]
        %v881 = vadd.f32 %v464, %v599
        %v882 = vadd.f32 %v468, %v599
        %v883 = vadd.f32 %v472, %v599
        %v884 = vadd.f32 %v476, %v599
        %v885 = vadd.f32 %v480, %v599
        %v886 = vadd.f32 %v484, %v599
        %v887 = vadd.f32 %v488, %v599
        %v888 = vadd.f32 %v492, %v599
        %v889 = vadd.f32 %v496, %v599
        %v890 = vadd.f32 %v500, %v599
        %v891 = vadd.f32 %v504, %v599
        %v892 = vadd.f32 %v508, %v599
        %v893 = vadd.f32 %v512, %v599
        %v894 = vadd.f32 %v516, %v599
        %v895 = vadd.f32 %v520, %v599
        %v896 = vadd.f32 %v524, %v599
        %v897 = vadd.f32 %v528, %v599
        %v898 = vadd.f32 %v532, %v599
        %v899 = vadd.f32 %v536, %v599
        %v900 = vadd.f32 %v540, %v599
        %v901 = vadd.f32 %v544, %v599
        %v902 = vadd.f32 %v548, %v599
        %v903 = vadd.f32 %v552, %v599
        %v904 = vadd.f32 %v556, %v599
        %v905 = vmul.f32 %v739, 2.0
        %v906 = vmul.f32 %v744, 2.0
        %v907 = vmul.f32 %v749, 2.0
        %v908 = vmul.f32 %v754, 2.0
        %v909 = vmul.f32 %v759, 2.0
        %v910 = vmul.f32 %v764, 2.0
        %v911 = vmul.f32 %v769, 2.0
        %v912 = vmul.f32 %v774, 2.0
        %v913 = vmul.f32 %v779, 2.0
        %v914 = vmul.f32 %v784, 2.0
        %v915 = vmul.f32 %v789, 2.0
        %v916 = vmul.f32 %v794, 2.0
        %v917 = vmul.f32 %v799, 2.0
        %v918 = vmul.f32 %v804, 2.0
        %v919 = vmul.f32 %v809, 2.0
        %v920 = vmul.f32 %v814, 2.0
        %v921 = vmul.f32 %v819, 2.0
        %v922 = vmul.f32 %v824, 2.0
        %v923 = vmul.f32 %v829, 2.0
        %v924 = vmul.f32 %v834, 2.0
        %v925 = vmul.f32 %v839, 2.0
        %v926 = vmul.f32 %v844, 2.0
        %v927 = vmul.f32 %v849, 2.0
        %v928 = vmul.f32 %v854, 2.0
        %v929 = vsub.f32 %v881, %v905
        %v930 = vsub.f32 %v882, %v906
        %v931 = vsub.f32 %v883, %v907
        %v932 = vsub.f32 %v884, %v908
        %v933 = vsub.f32 %v885, %v909
        %v934 = vsub.f32 %v886, %v910
        %v935 = vsub.f32 %v887, %v911
        %v936 = vsub.f32 %v888, %v912
        %v937 = vsub.f32 %v889, %v913
        %v938 = vsub.f32 %v890, %v914
        %v939 = vsub.f32 %v891, %v915
        %v940 = vsub.f32 %v892, %v916
        %v941 = vsub.f32 %v893, %v917
        %v942 = vsub.f32 %v894, %v918
        %v943 = vsub.f32 %v895, %v919
        %v944 = vsub.f32 %v896, %v920
        %v945 = vsub.f32 %v897, %v921
        %v946 = vsub.f32 %v898, %v922
        %v947 = vsub.f32 %v899, %v923
        %v948 = vsub.f32 %v900, %v924
        %v949 = vsub.f32 %v901, %v925
        %v950 = vsub.f32 %v902, %v926
        %v951 = vsub.f32 %v903, %v927
        %v952 = vsub.f32 %v904, %v928
        %v953 = vadd.f32 %v857, %v929
        %v954 = vadd.f32 %v858, %v930
        %v955 = vadd.f32 %v859, %v931
        %v956 = vadd.f32 %v860, %v932
        %v957 = vadd.f32 %v861, %v933
        %v958 = vadd.f32 %v862, %v934
        %v959 = vadd.f32 %v863, %v935
        %v960 = vadd.f32 %v864, %v936
        %v961 = vadd.f32 %v865, %v937
        %v962 = vadd.f32 %v866, %v938
        %v963 = vadd.f32 %v867, %v939
        %v964 = vadd.f32 %v868, %v940
        %v965 = vadd.f32 %v869, %v941
        %v966 = vadd.f32 %v870, %v942
        %v967 = vadd.f32 %v871, %v943
        %v968 = vadd.f32 %v872, %v944
        %v969 = vadd.f32 %v873, %v945
        %v970 = vadd.f32 %v874, %v946
        %v971 = vadd.f32 %v875, %v947
        %v972 = vadd.f32 %v876, %v948
        %v973 = vadd.f32 %v877, %v949
        %v974 = vadd.f32 %v878, %v950
        %v975 = vadd.f32 %v879, %v951
        %v976 = vadd.f32 %v880, %v952
        %977 = vst [vmem:[#allocation2] sm:$0xff] %v953
        %978 = vst [vmem:[#allocation2 + $0x8] sm:$0xff] %v954
        %979 = vst [vmem:[#allocation2 + $0x10] sm:$0xff] %v955
        %980 = vst [vmem:[#allocation2 + $0x18] sm:$0xff] %v956
        %981 = vst [vmem:[#allocation2 + $0x20] sm:$0xff] %v957
        %982 = vst [vmem:[#allocation2 + $0x28] sm:$0xff] %v958
        %983 = vst [vmem:[#allocation2 + $0x30] sm:$0xff] %v959
        %984 = vst [vmem:[#allocation2 + $0x38] sm:$0xff] %v960
        %985 = vst [vmem:[#allocation2 + $0x40] sm:$0xff] %v961
        %986 = vst [vmem:[#allocation2 + $0x48] sm:$0xff] %v962
        %987 = vst [vmem:[#allocation2 + $0x50] sm:$0xff] %v963
        %988 = vst [vmem:[#allocation2 + $0x58] sm:$0xff] %v964
        %989 = vst [vmem:[#allocation2 + $0x60] sm:$0xff] %v965
        %990 = vst [vmem:[#allocation2 + $0x68] sm:$0xff] %v966
        %991 = vst [vmem:[#allocation2 + $0x70] sm:$0xff] %v967
        %992 = vst [vmem:[#allocation2 + $0x78] sm:$0xff] %v968
        %993 = vst [vmem:[#allocation2 + $0x80] sm:$0xff] %v969
        %994 = vst [vmem:[#allocation2 + $0x88] sm:$0xff] %v970
        %995 = vst [vmem:[#allocation2 + $0x90] sm:$0xff] %v971
        %996 = vst [vmem:[#allocation2 + $0x98] sm:$0xff] %v972
        %997 = vst [vmem:[#allocation2 + $0xa0] sm:$0xff] %v973
        %998 = vst [vmem:[#allocation2 + $0xa8] sm:$0xff] %v974
        %999 = vst [vmem:[#allocation2 + $0xb0] sm:$0xff] %v975
        %1000 = vst [vmem:[#allocation2 + $0xb8] sm:$0xff] %v976
        // Predicated region
        $region71: #{tpu_custom_call.1} parent=61 // pred_check
          %p1001 = pneg %p317
        $region72: #{tpu_custom_call.1} parent=61 // pred_check_branch
          %1003 = sbr.rel (%p1001) target = $region74
        $region73: #{tpu_custom_call.1} parent=61 // pred_region
          %v1004 = vld [vmem:[#allocation2] sm:$0xff]
          %v1005 = vld [vmem:[#allocation2 + $0x8] sm:$0xff]
          %v1006 = vld [vmem:[#allocation2 + $0x10] sm:$0xff]
          %v1007 = vld [vmem:[#allocation2 + $0x18] sm:$0xff]
          %v1008 = vld [vmem:[#allocation2 + $0x20] sm:$0xff]
          %v1009 = vld [vmem:[#allocation2 + $0x28] sm:$0xff]
          %v1010 = vld [vmem:[#allocation2 + $0x30] sm:$0xff]
          %v1011 = vld [vmem:[#allocation2 + $0x38] sm:$0xff]
          %v1012 = vld [vmem:[#allocation2 + $0x40] sm:$0xff]
          %v1013 = vld [vmem:[#allocation2 + $0x48] sm:$0xff]
          %v1014 = vld [vmem:[#allocation2 + $0x50] sm:$0xff]
          %v1015 = vld [vmem:[#allocation2 + $0x58] sm:$0xff]
          %v1016 = vld [vmem:[#allocation2 + $0x60] sm:$0xff]
          %v1017 = vld [vmem:[#allocation2 + $0x68] sm:$0xff]
          %v1018 = vld [vmem:[#allocation2 + $0x70] sm:$0xff]
          %v1019 = vld [vmem:[#allocation2 + $0x78] sm:$0xff]
          %v1020 = vld [vmem:[#allocation2 + $0x80] sm:$0xff]
          %v1021 = vld [vmem:[#allocation2 + $0x88] sm:$0xff]
          %v1022 = vld [vmem:[#allocation2 + $0x90] sm:$0xff]
          %v1023 = vld [vmem:[#allocation2 + $0x98] sm:$0xff]
          %v1024 = vld [vmem:[#allocation2 + $0xa0] sm:$0xff]
          %v1025 = vld [vmem:[#allocation2 + $0xa8] sm:$0xff]
          %v1026 = vld [vmem:[#allocation2 + $0xb0] sm:$0xff]
          %v1027 = vld [vmem:[#allocation2 + $0xb8] sm:$0xff]
          %v1028 = vmax.f32 %v1004, 0.0
          %v1029 = vmax.f32 %v1005, 0.0
          %v1030 = vmax.f32 %v1006, 0.0
          %v1031 = vmax.f32 %v1007, 0.0
          %v1032 = vmax.f32 %v1008, 0.0
          %v1033 = vmax.f32 %v1009, 0.0
          %v1034 = vmax.f32 %v1010, 0.0
          %v1035 = vmax.f32 %v1011, 0.0
          %v1036 = vmax.f32 %v1012, 0.0
          %v1037 = vmax.f32 %v1013, 0.0
          %v1038 = vmax.f32 %v1014, 0.0
          %v1039 = vmax.f32 %v1015, 0.0
          %v1040 = vmax.f32 %v1016, 0.0
          %v1041 = vmax.f32 %v1017, 0.0
          %v1042 = vmax.f32 %v1018, 0.0
          %v1043 = vmax.f32 %v1019, 0.0
          %v1044 = vmax.f32 %v1020, 0.0
          %v1045 = vmax.f32 %v1021, 0.0
          %v1046 = vmax.f32 %v1022, 0.0
          %v1047 = vmax.f32 %v1023, 0.0
          %v1048 = vmax.f32 %v1024, 0.0
          %v1049 = vmax.f32 %v1025, 0.0
          %v1050 = vmax.f32 %v1026, 0.0
          %v1051 = vmax.f32 %v1027, 0.0
          %v1052 = vrsqrt.pop %v1028
          %v1053 = vmul.f32 %v1028, %v1052
          %vm1054 = vcmp.eq.f32.partialorder %v1028, inf
          %v1055 = vsel %vm1054, %v1028, %v1053
          %vm1056 = vcmp.eq.f32.partialorder %v1028, 0.0
          %v1057 = vand.u32 %v1028, 2147483648
          %v1058 = vsel %vm1056, %v1057, %v1055
          %v1059 = vrsqrt.pop %v1029
          %v1060 = vmul.f32 %v1029, %v1059
          %vm1061 = vcmp.eq.f32.partialorder %v1029, inf
          %v1062 = vsel %vm1061, %v1029, %v1060
          %vm1063 = vcmp.eq.f32.partialorder %v1029, 0.0
          %v1064 = vand.u32 %v1029, 2147483648
          %v1065 = vsel %vm1063, %v1064, %v1062
          %v1066 = vrsqrt.pop %v1030
          %v1067 = vmul.f32 %v1030, %v1066
          %vm1068 = vcmp.eq.f32.partialorder %v1030, inf
          %v1069 = vsel %vm1068, %v1030, %v1067
          %vm1070 = vcmp.eq.f32.partialorder %v1030, 0.0
          %v1071 = vand.u32 %v1030, 2147483648
          %v1072 = vsel %vm1070, %v1071, %v1069
          %v1073 = vrsqrt.pop %v1031
          %v1074 = vmul.f32 %v1031, %v1073
          %vm1075 = vcmp.eq.f32.partialorder %v1031, inf
          %v1076 = vsel %vm1075, %v1031, %v1074
          %vm1077 = vcmp.eq.f32.partialorder %v1031, 0.0
          %v1078 = vand.u32 %v1031, 2147483648
          %v1079 = vsel %vm1077, %v1078, %v1076
          %v1080 = vrsqrt.pop %v1032
          %v1081 = vmul.f32 %v1032, %v1080
          %vm1082 = vcmp.eq.f32.partialorder %v1032, inf
          %v1083 = vsel %vm1082, %v1032, %v1081
          %vm1084 = vcmp.eq.f32.partialorder %v1032, 0.0
          %v1085 = vand.u32 %v1032, 2147483648
          %v1086 = vsel %vm1084, %v1085, %v1083
          %v1087 = vrsqrt.pop %v1033
          %v1088 = vmul.f32 %v1033, %v1087
          %vm1089 = vcmp.eq.f32.partialorder %v1033, inf
          %v1090 = vsel %vm1089, %v1033, %v1088
          %vm1091 = vcmp.eq.f32.partialorder %v1033, 0.0
          %v1092 = vand.u32 %v1033, 2147483648
          %v1093 = vsel %vm1091, %v1092, %v1090
          %v1094 = vrsqrt.pop %v1034
          %v1095 = vmul.f32 %v1034, %v1094
          %vm1096 = vcmp.eq.f32.partialorder %v1034, inf
          %v1097 = vsel %vm1096, %v1034, %v1095
          %vm1098 = vcmp.eq.f32.partialorder %v1034, 0.0
          %v1099 = vand.u32 %v1034, 2147483648
          %v1100 = vsel %vm1098, %v1099, %v1097
          %v1101 = vrsqrt.pop %v1035
          %v1102 = vmul.f32 %v1035, %v1101
          %vm1103 = vcmp.eq.f32.partialorder %v1035, inf
          %v1104 = vsel %vm1103, %v1035, %v1102
          %vm1105 = vcmp.eq.f32.partialorder %v1035, 0.0
          %v1106 = vand.u32 %v1035, 2147483648
          %v1107 = vsel %vm1105, %v1106, %v1104
          %v1108 = vrsqrt.pop %v1036
          %v1109 = vmul.f32 %v1036, %v1108
          %vm1110 = vcmp.eq.f32.partialorder %v1036, inf
          %v1111 = vsel %vm1110, %v1036, %v1109
          %vm1112 = vcmp.eq.f32.partialorder %v1036, 0.0
          %v1113 = vand.u32 %v1036, 2147483648
          %v1114 = vsel %vm1112, %v1113, %v1111
          %v1115 = vrsqrt.pop %v1037
          %v1116 = vmul.f32 %v1037, %v1115
          %vm1117 = vcmp.eq.f32.partialorder %v1037, inf
          %v1118 = vsel %vm1117, %v1037, %v1116
          %vm1119 = vcmp.eq.f32.partialorder %v1037, 0.0
          %v1120 = vand.u32 %v1037, 2147483648
          %v1121 = vsel %vm1119, %v1120, %v1118
          %v1122 = vrsqrt.pop %v1038
          %v1123 = vmul.f32 %v1038, %v1122
          %vm1124 = vcmp.eq.f32.partialorder %v1038, inf
          %v1125 = vsel %vm1124, %v1038, %v1123
          %vm1126 = vcmp.eq.f32.partialorder %v1038, 0.0
          %v1127 = vand.u32 %v1038, 2147483648
          %v1128 = vsel %vm1126, %v1127, %v1125
          %v1129 = vrsqrt.pop %v1039
          %v1130 = vmul.f32 %v1039, %v1129
          %vm1131 = vcmp.eq.f32.partialorder %v1039, inf
          %v1132 = vsel %vm1131, %v1039, %v1130
          %vm1133 = vcmp.eq.f32.partialorder %v1039, 0.0
          %v1134 = vand.u32 %v1039, 2147483648
          %v1135 = vsel %vm1133, %v1134, %v1132
          %v1136 = vrsqrt.pop %v1040
          %v1137 = vmul.f32 %v1040, %v1136
          %vm1138 = vcmp.eq.f32.partialorder %v1040, inf
          %v1139 = vsel %vm1138, %v1040, %v1137
          %vm1140 = vcmp.eq.f32.partialorder %v1040, 0.0
          %v1141 = vand.u32 %v1040, 2147483648
          %v1142 = vsel %vm1140, %v1141, %v1139
          %v1143 = vrsqrt.pop %v1041
          %v1144 = vmul.f32 %v1041, %v1143
          %vm1145 = vcmp.eq.f32.partialorder %v1041, inf
          %v1146 = vsel %vm1145, %v1041, %v1144
          %vm1147 = vcmp.eq.f32.partialorder %v1041, 0.0
          %v1148 = vand.u32 %v1041, 2147483648
          %v1149 = vsel %vm1147, %v1148, %v1146
          %v1150 = vrsqrt.pop %v1042
          %v1151 = vmul.f32 %v1042, %v1150
          %vm1152 = vcmp.eq.f32.partialorder %v1042, inf
          %v1153 = vsel %vm1152, %v1042, %v1151
          %vm1154 = vcmp.eq.f32.partialorder %v1042, 0.0
          %v1155 = vand.u32 %v1042, 2147483648
          %v1156 = vsel %vm1154, %v1155, %v1153
          %v1157 = vrsqrt.pop %v1043
          %v1158 = vmul.f32 %v1043, %v1157
          %vm1159 = vcmp.eq.f32.partialorder %v1043, inf
          %v1160 = vsel %vm1159, %v1043, %v1158
          %vm1161 = vcmp.eq.f32.partialorder %v1043, 0.0
          %v1162 = vand.u32 %v1043, 2147483648
          %v1163 = vsel %vm1161, %v1162, %v1160
          %v1164 = vrsqrt.pop %v1044
          %v1165 = vmul.f32 %v1044, %v1164
          %vm1166 = vcmp.eq.f32.partialorder %v1044, inf
          %v1167 = vsel %vm1166, %v1044, %v1165
          %vm1168 = vcmp.eq.f32.partialorder %v1044, 0.0
          %v1169 = vand.u32 %v1044, 2147483648
          %v1170 = vsel %vm1168, %v1169, %v1167
          %v1171 = vrsqrt.pop %v1045
          %v1172 = vmul.f32 %v1045, %v1171
          %vm1173 = vcmp.eq.f32.partialorder %v1045, inf
          %v1174 = vsel %vm1173, %v1045, %v1172
          %vm1175 = vcmp.eq.f32.partialorder %v1045, 0.0
          %v1176 = vand.u32 %v1045, 2147483648
          %v1177 = vsel %vm1175, %v1176, %v1174
          %v1178 = vrsqrt.pop %v1046
          %v1179 = vmul.f32 %v1046, %v1178
          %vm1180 = vcmp.eq.f32.partialorder %v1046, inf
          %v1181 = vsel %vm1180, %v1046, %v1179
          %vm1182 = vcmp.eq.f32.partialorder %v1046, 0.0
          %v1183 = vand.u32 %v1046, 2147483648
          %v1184 = vsel %vm1182, %v1183, %v1181
          %v1185 = vrsqrt.pop %v1047
          %v1186 = vmul.f32 %v1047, %v1185
          %vm1187 = vcmp.eq.f32.partialorder %v1047, inf
          %v1188 = vsel %vm1187, %v1047, %v1186
          %vm1189 = vcmp.eq.f32.partialorder %v1047, 0.0
          %v1190 = vand.u32 %v1047, 2147483648
          %v1191 = vsel %vm1189, %v1190, %v1188
          %v1192 = vrsqrt.pop %v1048
          %v1193 = vmul.f32 %v1048, %v1192
          %vm1194 = vcmp.eq.f32.partialorder %v1048, inf
          %v1195 = vsel %vm1194, %v1048, %v1193
          %vm1196 = vcmp.eq.f32.partialorder %v1048, 0.0
          %v1197 = vand.u32 %v1048, 2147483648
          %v1198 = vsel %vm1196, %v1197, %v1195
          %v1199 = vrsqrt.pop %v1049
          %v1200 = vmul.f32 %v1049, %v1199
          %vm1201 = vcmp.eq.f32.partialorder %v1049, inf
          %v1202 = vsel %vm1201, %v1049, %v1200
          %vm1203 = vcmp.eq.f32.partialorder %v1049, 0.0
          %v1204 = vand.u32 %v1049, 2147483648
          %v1205 = vsel %vm1203, %v1204, %v1202
          %v1206 = vrsqrt.pop %v1050
          %v1207 = vmul.f32 %v1050, %v1206
          %vm1208 = vcmp.eq.f32.partialorder %v1050, inf
          %v1209 = vsel %vm1208, %v1050, %v1207
          %vm1210 = vcmp.eq.f32.partialorder %v1050, 0.0
          %v1211 = vand.u32 %v1050, 2147483648
          %v1212 = vsel %vm1210, %v1211, %v1209
          %v1213 = vrsqrt.pop %v1051
          %v1214 = vmul.f32 %v1051, %v1213
          %vm1215 = vcmp.eq.f32.partialorder %v1051, inf
          %v1216 = vsel %vm1215, %v1051, %v1214
          %vm1217 = vcmp.eq.f32.partialorder %v1051, 0.0
          %v1218 = vand.u32 %v1051, 2147483648
          %v1219 = vsel %vm1217, %v1218, %v1216
          %1220 = vst [vmem:[%s302] sm:$0xff] %v1058
          %1221 = vst [vmem:[%s302 + $0x8] sm:$0xff] %v1065
          %1222 = vst [vmem:[%s302 + $0x10] sm:$0xff] %v1072
          %1223 = vst [vmem:[%s302 + $0x18] sm:$0xff] %v1079
          %1224 = vst [vmem:[%s302 + $0x20] sm:$0xff] %v1086
          %1225 = vst [vmem:[%s302 + $0x28] sm:$0xff] %v1093
          %1226 = vst [vmem:[%s302 + $0x30] sm:$0xff] %v1100
          %1227 = vst [vmem:[%s302 + $0x38] sm:$0xff] %v1107
          %1228 = vst [vmem:[%s302 + $0x40] sm:$0xff] %v1114
          %1229 = vst [vmem:[%s302 + $0x48] sm:$0xff] %v1121
          %1230 = vst [vmem:[%s302 + $0x50] sm:$0xff] %v1128
          %1231 = vst [vmem:[%s302 + $0x58] sm:$0xff] %v1135
          %1232 = vst [vmem:[%s302 + $0x60] sm:$0xff] %v1142
          %1233 = vst [vmem:[%s302 + $0x68] sm:$0xff] %v1149
          %1234 = vst [vmem:[%s302 + $0x70] sm:$0xff] %v1156
          %1235 = vst [vmem:[%s302 + $0x78] sm:$0xff] %v1163
          %1236 = vst [vmem:[%s302 + $0x80] sm:$0xff] %v1170
          %1237 = vst [vmem:[%s302 + $0x88] sm:$0xff] %v1177
          %1238 = vst [vmem:[%s302 + $0x90] sm:$0xff] %v1184
          %1239 = vst [vmem:[%s302 + $0x98] sm:$0xff] %v1191
          %1240 = vst [vmem:[%s302 + $0xa0] sm:$0xff] %v1198
          %1241 = vst [vmem:[%s302 + $0xa8] sm:$0xff] %v1205
          %1242 = vst [vmem:[%s302 + $0xb0] sm:$0xff] %v1212
          %1243 = vst [vmem:[%s302 + $0xb8] sm:$0xff] %v1219
        $region74: #{tpu_custom_call.1} parent=61 // pred_fallthru
          _
        %s1244 = sand.u32 %s101, 1
        %s1245 = scalar_lea.sflag [#allocation5], %s1244
        %s1246 = sand.u32 %s101, 1
        %s1247 = smul.addr %s1246, 192
        %s1248 = scalar_lea.vmem [#allocation4], %s1247
        // Predicated region
        $region75: #{tpu_custom_call.1} parent=61 // pred_check
          %p1249 = pneg %p111
        $region76: #{tpu_custom_call.1} parent=61 // pred_check_branch
          %1251 = sbr.rel (%p1249) target = $region78
        $region77: #{tpu_custom_call.1} parent=61 // pred_region
          %s1252 = smul.u32 24, %s21
          %s1254 = ssub.s32 3072, 3072
          %1255 = vsyncadd %s1245, %s1254
          %s1256 = smul.addr %s1252, 2
          %s1257 = sadd.s32 %s22, %s1256
          %s1258 = smul.addr %s1257, 128
          %s1259 = scalar_lea.hbm %s2, %s1258
          %s1260 = sshll.u32 %s1248, 4
          %s1261 = int_to_ptr.vmem [resolvable:$true] %s1260
          %1266 = dma.vmem_to_hbm [thread:$0]  %s1261, 3072, %s1259, %s1245, 128, 256, 8
        $region78: #{tpu_custom_call.1} parent=61 // pred_fallthru
          _
      $region62: #{tpu_custom_call.1} parent=5 // pred_fallthru
        _
      %p1267 = scmp.le.s32.totalorder 2, %s11
      // Predicated region
      $region79: #{tpu_custom_call.1} parent=5 // pred_check
        %p1268 = pneg %p1267
      $region80: #{tpu_custom_call.1} parent=5 // pred_check_branch
        %1270 = sbr.rel (%p1268) target = $region82
      $region81: #{tpu_custom_call.1} parent=5 // pred_region
        %s1271 = ssub.s32 %s11, 2
        // Predicated region
        $region83: #{tpu_custom_call.1} parent=81 // pred_check
          %p1272 = pneg %p117
        $region84: #{tpu_custom_call.1} parent=81 // pred_check_branch
          %1274 = sbr.rel (%p1272) target = $region86
        $region85: #{tpu_custom_call.1} parent=81 // pred_region
          %s1275 = sand.u32 %s102, 1
          %s1276 = scalar_lea.sflag [#allocation5], %s1275
          %s1277 = sand.u32 %s102, 1
          %s1278 = smul.addr %s1277, 192
          %s1279 = scalar_lea.vmem [#allocation4], %s1278
          %1280 = dma.done %s1276, 3072
        $region86: #{tpu_custom_call.1} parent=81 // pred_fallthru
          _
      $region82: #{tpu_custom_call.1} parent=5 // pred_fallthru
        _
    $region6: #{tpu_custom_call.1} parent=1 // loop_footer
      %s15 = sadd.s32 1, %s11
    $region7: #{tpu_custom_call.1} parent=1 // loop_footer_branch
      %10 = sbr.rel target = $region3
    $region8: #{tpu_custom_call.1} parent=1 // loop_exit
      _
    %1281 = vsyncpa [#allocation5], 1
    %s1282 = scalar_lea.sflag [#allocation5], 1
    %1283 = vsyncpa %s1282, 1

</llo_original>
